<compile_context>
chip_gen: v7x
topology: tpu7x:2x2x1
jax: 0.10.0
libtpu: 0.0.40
codegen_flags: <defaults>
</compile_context>

<pallas_src>
import functools

import numpy as np
import jax
import jax.numpy as jnp
from jax.experimental import pallas as pl
from jax.experimental.pallas import tpu as pltpu


# ---------------- quantization helpers (module-init glue, plain JAX) ----------------

def _round_up(x: int, m: int) -> int:
    return ((x + m - 1) // m) * m


def get_quantized_range(bitwidth: int):
    qmin = -(1 << (bitwidth - 1))
    qmax = (1 << (bitwidth - 1)) - 1
    return qmin, qmax


def linear_quantize_tensor(fp_tensor, bitwidth, scale, zero_point):
    qmin, qmax = get_quantized_range(bitwidth)
    q = jnp.round(fp_tensor / scale) + zero_point
    return jnp.clip(q, qmin, qmax).astype(jnp.int32)


def linear_quantize_per_channel_symmetric(symmetric_fp_tensor, bitwidth, channel_dim=0):
    # weight: (out_features, in_features), channel_dim=0
    qmin, qmax = get_quantized_range(bitwidth)
    max_abs = jnp.max(jnp.abs(symmetric_fp_tensor), axis=1, keepdims=True)   # (out, 1)
    scale = max_abs / qmax
    scale = jnp.where(max_abs == 0, jnp.ones_like(scale), scale)             # guard all-zero rows
    q_w = jnp.clip(jnp.round(symmetric_fp_tensor / scale), qmin, qmax).astype(jnp.int8)
    return q_w, scale, 0


def compute_shifted_q_bias(bias, weight_scale, input_scale, quantized_weight, input_zero_point):
    bias_scale = weight_scale.reshape(-1) * input_scale                      # (out,)
    q_bias = linear_quantize_tensor(bias, bitwidth=32, scale=bias_scale, zero_point=0)
    offset = input_zero_point * jnp.sum(quantized_weight.astype(jnp.int32), axis=1)
    return (q_bias - offset).astype(jnp.int32), q_bias


def _tpu_chip_major() -> int:
    names = []
    try:
        names.append(str(pltpu.get_tpu_info().chip_version).lower())
    except Exception:
        pass
    try:
        names.append(jax.devices()[0].device_kind.lower())
    except Exception:
        pass
    for name in names:
        for major in (7, 6, 5, 4):
            if f"v{major}" in name:
                return major
    return 0


def _maybe_buffered_spec(block_shape, index_map, want_deeper):
    # Deeper (3-buffer) pipelining for the weight stream on v5e's weaker HBM.
    if want_deeper and hasattr(pl, "Buffered"):
        try:
            return pl.BlockSpec(block_shape, index_map, pipeline_mode=pl.Buffered(3))
        except TypeError:
            pass
    return pl.BlockSpec(block_shape, index_map)


# ---------------- Pallas kernels: quantized-linear hot path ----------------

def _epilogue(acc_f32, s_ref, fb_ref, o_ref, qmin, qmax):
    # q_y = (S_W*S_X/S_y) * acc + (scale*shifted_bias + Z_y), round, clip, int8
    out = s_ref[...] * acc_f32 + fb_ref[...]
    o_ref[...] = jnp.clip(jnp.round(out), qmin, qmax).astype(jnp.int8)


def _qlinear_kernel_fullk(x_ref, wt_ref, s_ref, fb_ref, o_ref, *,
                          qmin, qmax, use_int8_mxu):
    # Whole-K reduction in a single MXU dot (K tile == full padded K).
    if use_int8_mxu:
        acc = jnp.dot(x_ref[...], wt_ref[...],
                      preferred_element_type=jnp.int32).astype(jnp.float32)
    else:
        # int8 is exactly representable in bf16; Kp <= 1024 keeps the f32 sum < 2^24 (exact).
        acc = jnp.dot(x_ref[...].astype(jnp.bfloat16),
                      wt_ref[...].astype(jnp.bfloat16),
                      preferred_element_type=jnp.float32)
    _epilogue(acc, s_ref, fb_ref, o_ref, qmin, qmax)


def _qlinear_kernel_kgrid(x_ref, wt_ref, s_ref, fb_ref, o_ref, acc_ref, *,
                          qmin, qmax, use_int8_mxu):
    k = pl.program_id(2)

    @pl.when(k == 0)
    def _init():
        acc_ref[...] = jnp.zeros_like(acc_ref)

    if use_int8_mxu:
        # v5e/v6e: native int8 x int8 -> int32 on the MXU (exact integer accumulation).
        acc_ref[...] += jnp.dot(x_ref[...], wt_ref[...],
                                preferred_element_type=jnp.int32)
    else:
        # v7x / unknown: bf16 MXU with an *exact* int32 running sum.  Each per-step f32
        # partial is an exact integer (tk <= 1024 -> |partial| < 2^24), cast to int32.
        part = jnp.dot(x_ref[...].astype(jnp.bfloat16),
                       wt_ref[...].astype(jnp.bfloat16),
                       preferred_element_type=jnp.float32)
        acc_ref[...] += part.astype(jnp.int32)

    @pl.when(k == pl.num_programs(2) - 1)
    def _finalize():
        _epilogue(acc_ref[...].astype(jnp.float32), s_ref, fb_ref, o_ref, qmin, qmax)


class QuantizedLinear:
    def __init__(self, weight_fp, bias_fp, input_scale, input_zero_point,
                 output_scale, output_zero_point, bitwidth=8,
                 tm=512, tn=512, tk=2048):
        self.bitwidth = bitwidth
        self.input_scale = float(input_scale)
        self.input_zero_point = int(input_zero_point)
        self.output_scale = float(output_scale)
        self.output_zero_point = float(output_zero_point)

        self.chip_major = _tpu_chip_major()
        # native int8 MXU path on v5e/v5p/v6e; v7x (and unknown) use the exact bf16 fallback
        self.use_int8_mxu = self.chip_major in (5, 6)

        # quantize weight (per-output-channel symmetric) and fold input-zero-point into bias
        self.weight, self.weight_scale, _ = linear_quantize_per_channel_symmetric(
            weight_fp, bitwidth=bitwidth, channel_dim=0)            # int8 (out, in), f32 (out, 1)
        self.bias, _ = compute_shifted_q_bias(
            bias=bias_fp, weight_scale=self.weight_scale, input_scale=self.input_scale,
            quantized_weight=self.weight, input_zero_point=self.input_zero_point)  # int32 (out,)

        N, K = self.weight.shape
        self.out_features, self.in_features = N, K

        # ---------------- tile plan ----------------
        self.tm_pref = max(32, int(tm))
        # bf16 fallback exactness bound: per-step reduction length <= 1024 keeps sums < 2^24
        tk_cap = int(tk) if self.use_int8_mxu else min(int(tk), 1024)

        K128 = _round_up(K, 128)
        ksteps = -(-K128 // max(128, tk_cap))
        self.tk = _round_up(-(-K128 // ksteps), 128)
        self.Kp = self.tk * ksteps
        self.single_k = (ksteps == 1)        # whole K fits one tile -> weight-resident 2D plan

        N128 = _round_up(N, 128)
        nsteps = -(-N128 // max(128, int(tn)))
        self.tn = _round_up(-(-N128 // nsteps), 128)
        self.Np = self.tn * nsteps

        # ---------------- hoisted per-call prep ----------------
        wt = jnp.transpose(self.weight)                              # (K, N) int8
        self.wt_padded = jnp.pad(wt, ((0, self.Kp - K), (0, self.Np - N)))
        # TODO(synk): for compute-bound (large-M) layers on v7x, optionally pre-cast wt_padded
        # to bf16 at init to remove the per-step int8->bf16 VPU cast (trades 2x weight bytes).

        chan_scale = (self.weight_scale.reshape(1, N)
                      * self.input_scale / self.output_scale).astype(jnp.float32)
        fused_bias = (chan_scale * self.bias.reshape(1, N).astype(jnp.float32)
                      + self.output_zero_point).astype(jnp.float32)
        self.chan_scale_row = jnp.pad(chan_scale, ((0, 0), (0, self.Np - N)))
        self.fused_bias_row = jnp.pad(fused_bias, ((0, 0), (0, self.Np - N)))

    def _pick_tm(self, M: int) -> int:
        if M <= self.tm_pref:
            # int8 vregs pack 32 sublanes: keep the M block a 32-multiple.  Batches that are
            # already 32-aligned (common case) therefore need NO per-call activation pad.
            return _round_up(M, 32)
        # large batch: 256-tall tiles feed the 2x256x256 MXU (v6e/v7x) full-height
        t = self.tm_pref
        return (t // 256) * 256 if t >= 256 else _round_up(t, 32)

    def __call__(self, q_x):
        # q_x: int8 (batch, in_features)
        M, K = q_x.shape
        assert K == self.in_features

        tm = self._pick_tm(M)
        Mp = _round_up(M, tm)
        x = q_x
        if (Mp, self.Kp) != (M, K):
            # zero pad: padded K columns meet zero weight rows; padded M rows are sliced off
            x = jnp.pad(q_x, ((0, Mp - M), (0, self.Kp - K)))

        qmin, qmax = get_quantized_range(self.bitwidth)

        if self.single_k:
            tn = self.tn
            if (self.chip_major >= 7 and Mp // tm == 1 and self.Np // tn == 1
                    and tn % 256 == 0):
                tn //= 2        # keep both v7x TensorCores busy (>=2 blocks on a parallel axis)
            Kp = self.Kp
            # j outer, i inner: the W^T column block index is constant across the whole M
            # sweep, so the weight is DMA'd from HBM exactly once per output-column block.
            grid = (self.Np // tn, Mp // tm)
            kernel = functools.partial(_qlinear_kernel_fullk, qmin=qmin, qmax=qmax,
                                       use_int8_mxu=self.use_int8_mxu)
            in_specs = [
                pl.BlockSpec((tm, Kp), lambda j, i: (i, 0)),          # activations
                pl.BlockSpec((Kp, tn), lambda j, i: (0, j)),          # resident W^T column slab
                pl.BlockSpec((1, tn), lambda j, i: (0, j)),           # per-channel scale row
                pl.BlockSpec((1, tn), lambda j, i: (0, j)),           # fused bias row
            ]
            out_specs = pl.BlockSpec((tm, tn), lambda j, i: (i, j))
            scratch = []
            dims = ("parallel", "parallel")
            est = 2 * tm * Kp + 2 * Kp * tn + 2 * tm * tn + 16 * tn
        else:
            tn, tk = self.tn, self.tk
            grid = (Mp // tm, self.Np // tn, self.Kp // tk)
            kernel = functools.partial(_qlinear_kernel_kgrid, qmin=qmin, qmax=qmax,
                                       use_int8_mxu=self.use_int8_mxu)
            in_specs = [
                pl.BlockSpec((tm, tk), lambda i, j, k: (i, k)),       # activations
                _maybe_buffered_spec((tk, tn), lambda i, j, k: (k, j),
                                     want_deeper=(self.chip_major == 5)),  # W^T
                pl.BlockSpec((1, tn), lambda i, j, k: (0, j)),        # per-channel scale row
                pl.BlockSpec((1, tn), lambda i, j, k: (0, j)),        # fused bias row
            ]
            out_specs = pl.BlockSpec((tm, tn), lambda i, j, k: (i, j))
            scratch = [pltpu.VMEM((tm, tn), jnp.int32)]               # exact int32 accumulator
            dims = ("parallel", "parallel", "arbitrary")
            est = 2 * tm * tk + 3 * tk * tn + 2 * tm * tn + 4 * tm * tn + 16 * tn

        # explicit VMEM budget with headroom; capped well below v7x's 64 MiB/TC physical VMEM
        vmem_limit = min(48 * 1024 * 1024, max(int(est * 1.5) + (4 << 20), 16 << 20))

        out = pl.pallas_call(
            kernel,
            out_shape=jax.ShapeDtypeStruct((Mp, self.Np), jnp.int8),
            grid_spec=pltpu.PrefetchScalarGridSpec(
                num_scalar_prefetch=0,
                grid=grid,
                in_specs=in_specs,
                out_specs=out_specs,
                scratch_shapes=scratch,
            ),
            compiler_params=pltpu.CompilerParams(
                dimension_semantics=dims,
                vmem_limit_bytes=vmem_limit),
            cost_estimate=pl.CostEstimate(
                flops=2 * Mp * self.Np * self.Kp,
                transcendentals=0,
                bytes_accessed=(Mp * self.Kp            # int8 x
                                + self.Kp * self.Np     # int8 W^T (single-K plan: read once)
                                + Mp * self.Np          # int8 out
                                + 8 * self.Np)),        # scale + fused-bias rows
        )(x, self.wt_padded, self.chan_scale_row, self.fused_bias_row)

        return out[:M, :self.out_features]


# ---------------- reference for correctness (exact integer matmul on host) ----------------

def reference_forward(q_x, mod: QuantizedLinear):
    acc_i = np.asarray(q_x, dtype=np.int64) @ np.asarray(mod.weight, dtype=np.int64).T
    acc = jnp.asarray(acc_i, dtype=jnp.float32)                       # exact (< 2^24 here)
    scale = mod.chan_scale_row[:, :mod.out_features]
    fused = mod.fused_bias_row[:, :mod.out_features]                  # same constants as kernel
    out = scale * acc + fused
    qmin, qmax = get_quantized_range(mod.bitwidth)
    return jnp.clip(jnp.round(out), qmin, qmax).astype(jnp.int8)


if __name__ == "__main__":
    key = jax.random.PRNGKey(0)
    k_w1, k_b1, k_x1, k_w2, k_b2, k_x2 = jax.random.split(key, 6)

    # --- case 1: whole-K-resident 2D plan, ragged batch (M padded up to a 32-multiple) ---
    b1, in1, out1 = 200, 512, 384
    w1 = jax.random.normal(k_w1, (out1, in1), jnp.float32) * 0.1
    bias1 = jax.random.normal(k_b1, (out1,), jnp.float32) * 0.05
    mod1 = QuantizedLinear(w1, bias1, input_scale=0.02, input_zero_point=3,
                           output_scale=0.05, output_zero_point=-4, bitwidth=8)
    x1 = jax.random.randint(k_x1, (b1, in1), -128, 128, dtype=jnp.int32).astype(jnp.int8)
    y1 = mod1(x1)
    jax.block_until_ready(y1)
    assert y1.dtype == jnp.int8 and y1.shape == (b1, out1)
    assert bool(jnp.all(y1 == reference_forward(x1, mod1)))

    # --- case 2: K-reduction 3D plan (forced small tk) with K and N padding exercised ---
    b2, in2, out2 = 96, 576, 320
    w2 = jax.random.normal(k_w2, (out2, in2), jnp.float32) * 0.1
    bias2 = jax.random.normal(k_b2, (out2,), jnp.float32) * 0.05
    mod2 = QuantizedLinear(w2, bias2, input_scale=0.03, input_zero_point=-2,
                           output_scale=0.04, output_zero_point=5, bitwidth=8, tk=256)
    x2 = jax.random.randint(k_x2, (b2, in2), -128, 128, dtype=jnp.int32).astype(jnp.int8)
    y2 = mod2(x2)
    jax.block_until_ready(y2)
    assert y2.dtype == jnp.int8 and y2.shape == (b2, out2)
    assert bool(jnp.all(y2 == reference_forward(x2, mod2)))

    print("KERNEL_OK")
</pallas_src>

<mosaic_0001>
module attributes {stable_mosaic.version = 11 : i64} {
  func.func @_qlinear_kernel_fullk(%arg0: i32, %arg1: i32, %arg2: memref<224x512xi8, #tpu.memory_space<vmem>>, %arg3: memref<512x384xi8, #tpu.memory_space<vmem>>, %arg4: memref<1x384xf32, #tpu.memory_space<vmem>>, %arg5: memref<1x384xf32, #tpu.memory_space<vmem>>, %arg6: memref<224x384xi8, #tpu.memory_space<vmem>>) attributes {dimension_semantics = [#tpu.dimension_semantics<parallel>, #tpu.dimension_semantics<parallel>], iteration_bounds = array<i64: 1, 1>, scalar_prefetch = 0 : i64, scratch_operands = 0 : i64, tpu.core_type = #tpu.core_type<tc>, window_params = [{transform_indices = @transform_0, window_bounds = array<i64: 224, 512>}, {transform_indices = @transform_1, window_bounds = array<i64: 512, 384>}, {transform_indices = @transform_2, window_bounds = array<i64: 1, 384>}, {transform_indices = @transform_3, window_bounds = array<i64: 1, 384>}, {transform_indices = @transform_4, window_bounds = array<i64: 224, 384>}]} {
    %c0 = arith.constant 0 : index
    %c0_0 = arith.constant 0 : index
    %0 = vector.load %arg2[%c0, %c0_0] : memref<224x512xi8, #tpu.memory_space<vmem>>, vector<224x512xi8>
    %1 = arith.sitofp %0 : vector<224x512xi8> to vector<224x512xbf16>
    %c0_1 = arith.constant 0 : index
    %c0_2 = arith.constant 0 : index
    %2 = vector.load %arg3[%c0_1, %c0_2] : memref<512x384xi8, #tpu.memory_space<vmem>>, vector<512x384xi8>
    %3 = arith.sitofp %2 : vector<512x384xi8> to vector<512x384xbf16>
    %cst = arith.constant dense<0.000000e+00> : vector<224x384xf32>
    %4 = tpu.matmul %1, %3, %cst {dimension_numbers = #tpu.dot_dimension_numbers<[1], [0], [0], [1], [0, 0, 1, 1], [], []>} : vector<224x512xbf16>, vector<512x384xbf16>, vector<224x384xf32> -> vector<224x384xf32>
    %c0_3 = arith.constant 0 : index
    %c0_4 = arith.constant 0 : index
    %5 = vector.load %arg4[%c0_3, %c0_4] : memref<1x384xf32, #tpu.memory_space<vmem>>, vector<1x384xf32>
    %6 = vector.broadcast %5 : vector<1x384xf32> to vector<224x384xf32>
    %7 = arith.mulf %6, %4 : vector<224x384xf32>
    %c0_5 = arith.constant 0 : index
    %c0_6 = arith.constant 0 : index
    %8 = vector.load %arg5[%c0_5, %c0_6] : memref<1x384xf32, #tpu.memory_space<vmem>>, vector<1x384xf32>
    %9 = vector.broadcast %8 : vector<1x384xf32> to vector<224x384xf32>
    %10 = arith.addf %7, %9 : vector<224x384xf32>
    %11 = math.roundeven %10 : vector<224x384xf32>
    %c-128_i32 = arith.constant -128 : i32
    %c127_i32 = arith.constant 127 : i32
    %12 = arith.sitofp %c-128_i32 : i32 to f32
    %13 = vector.broadcast %12 : f32 to vector<224x384xf32>
    %14 = arith.maximumf %13, %11 : vector<224x384xf32>
    %15 = arith.sitofp %c127_i32 : i32 to f32
    %16 = vector.broadcast %15 : f32 to vector<224x384xf32>
    %17 = arith.minimumf %16, %14 : vector<224x384xf32>
    %18 = arith.fptosi %17 : vector<224x384xf32> to vector<224x384xi8>
    %c0_7 = arith.constant 0 : index
    %c0_8 = arith.constant 0 : index
    %19 = vector.load %arg6[%c0_7, %c0_8] : memref<224x384xi8, #tpu.memory_space<vmem>>, vector<224x384xi8>
    tpu.vector_store %arg6[%c0_7, %c0_8], %18 {strides = array<i32>} : memref<224x384xi8, #tpu.memory_space<vmem>>, vector<224x384xi8>,
    return
  }
  func.func @transform_0(%arg0: i32, %arg1: i32) -> (i32, i32) {
    %c0_i32 = arith.constant 0 : i32
    %c0_i32_0 = arith.constant 0 : i32
    return %arg1, %c0_i32 : i32, i32
  }
  func.func @transform_1(%arg0: i32, %arg1: i32) -> (i32, i32) {
    %c0_i32 = arith.constant 0 : i32
    %c0_i32_0 = arith.constant 0 : i32
    return %c0_i32, %arg0 : i32, i32
  }
  func.func @transform_2(%arg0: i32, %arg1: i32) -> (i32, i32) {
    %c0_i32 = arith.constant 0 : i32
    %c0_i32_0 = arith.constant 0 : i32
    return %c0_i32, %arg0 : i32, i32
  }
  func.func @transform_3(%arg0: i32, %arg1: i32) -> (i32, i32) {
    %c0_i32 = arith.constant 0 : i32
    %c0_i32_0 = arith.constant 0 : i32
    return %c0_i32, %arg0 : i32, i32
  }
  func.func @transform_4(%arg0: i32, %arg1: i32) -> (i32, i32) {
    %c0_i32 = arith.constant 0 : i32
    return %arg1, %arg0 : i32, i32
  }
}

</mosaic_0001>

<llo_original>
// kernel: tpu_custom_call.1
$region0: #{tpu_custom_call.1}
  #allocation0 [shape = 'u32[]', space=smem, size = 0x4, offset = 0x4, fixed_abs, tag = 'smem constant byte address 0x4 - core index']
  #allocation1 [shape = 'u32[144,128]{1,0:T(1,128)}', space=vmem, size = 0x12000, scoped, tag = 'internal scratch']
  %s0 = inlined_call_operand.hbm [shape: s8[224,512], index: 0, kind: input, shape index: {}]
  %s1 = inlined_call_operand.hbm [shape: s8[512,384], index: 1, kind: input, shape index: {}]
  %s2 = inlined_call_operand.vmem [shape: f32[1,384], index: 2, kind: input, shape index: {}]
  %s3 = inlined_call_operand.vmem [shape: f32[1,384], index: 3, kind: input, shape index: {}]
  %s4 = inlined_call_operand.hbm [shape: s8[224,384], index: 4, kind: output, shape index: {}]
  %s5 = sld [smem:[#allocation0]]
  $region34: #{tpu_custom_call.1} parent=0
    _
  %s7 = ssub.s32 1, %s5
  %s8 = scalar_select 0, %s7, %s5
  $region1: #{tpu_custom_call.1} parent=0
    #allocation2 [shape = 'u8[114688]{0}', space=vmem, size = 0x1c000, scoped, tag = 'input window, operand 0, single buffered']
    #allocation3 [shape = 's32[1]{0}', space=sflag, size = 0x4, scoped, tag = 'scoped memory for tpu_custom_call.1']
    #allocation4 [shape = 's32[1]{0}', space=sflag, size = 0x4, scoped, tag = 'scoped memory for tpu_custom_call.1']
    #allocation5 [shape = 'u8[196608]{0}', space=vmem, size = 0x30000, scoped, tag = 'input window, operand 1, single buffered']
    #allocation6 [shape = 's32[1]{0}', space=sflag, size = 0x4, scoped, tag = 'scoped memory for tpu_custom_call.1']
    #allocation7 [shape = 'u8[86016]{0}', space=vmem, size = 0x15000, scoped, tag = 'output window, operand 0, single buffered']
    %9 = vsyncpa [#allocation3], 0
    %10 = vsyncpa [#allocation6], 0
    %11 = vsyncpa [#allocation4], 0
    // Predicated region
    $region2: #{tpu_custom_call.1} parent=1 // pred_check
      _
    $region3: #{tpu_custom_call.1} parent=1 // pred_check_branch
      %13 = sbr.rel (0) target = $region5
    $region4: #{tpu_custom_call.1} parent=1 // pred_region
      %s15 = ssub.s32 3584, 3584
      %16 = vsyncadd [#allocation3], %s15
      %s17 = sshll.u32 [#allocation2], 4
      %s18 = int_to_ptr.vmem [resolvable:$true] %s17
      %23 = dma.hbm_to_vmem [thread:$0]  %s0, 3584, %s18, [#allocation3], 512, 512, 32
    $region5: #{tpu_custom_call.1} parent=1 // pred_fallthru
      _
    // Predicated region
    $region6: #{tpu_custom_call.1} parent=1 // pred_check
      _
    $region7: #{tpu_custom_call.1} parent=1 // pred_check_branch
      %25 = sbr.rel (0) target = $region9
    $region8: #{tpu_custom_call.1} parent=1 // pred_region
      %s27 = ssub.s32 6144, 6144
      %28 = vsyncadd [#allocation6], %s27
      %s29 = sshll.u32 [#allocation5], 4
      %s30 = int_to_ptr.vmem [resolvable:$true] %s29
      %35 = dma.hbm_to_vmem [thread:$0]  %s1, 6144, %s30, [#allocation6], 384, 384, 24
    $region9: #{tpu_custom_call.1} parent=1 // pred_fallthru
      _
    // Predicated region
    $region10: #{tpu_custom_call.1} parent=1 // pred_check
      _
    $region11: #{tpu_custom_call.1} parent=1 // pred_check_branch
      %37 = sbr.rel (0) target = $region13
    $region12: #{tpu_custom_call.1} parent=1 // pred_region
      _
    $region13: #{tpu_custom_call.1} parent=1 // pred_fallthru
      _
    // Predicated region
    $region14: #{tpu_custom_call.1} parent=1 // pred_check
      _
    $region15: #{tpu_custom_call.1} parent=1 // pred_check_branch
      %39 = sbr.rel (0) target = $region17
    $region16: #{tpu_custom_call.1} parent=1 // pred_region
      _
    $region17: #{tpu_custom_call.1} parent=1 // pred_fallthru
      _
    // Predicated region
    $region18: #{tpu_custom_call.1} parent=1 // pred_check
      _
    $region19: #{tpu_custom_call.1} parent=1 // pred_check_branch
      %41 = sbr.rel (0) target = $region21
    $region20: #{tpu_custom_call.1} parent=1 // pred_region
      %42 = dma.done [#allocation3], 3584
    $region21: #{tpu_custom_call.1} parent=1 // pred_fallthru
      _
    // Predicated region
    $region22: #{tpu_custom_call.1} parent=1 // pred_check
      _
    $region23: #{tpu_custom_call.1} parent=1 // pred_check_branch
      %44 = sbr.rel (0) target = $region25
    $region24: #{tpu_custom_call.1} parent=1 // pred_region
      %45 = dma.done [#allocation6], 6144
    $region25: #{tpu_custom_call.1} parent=1 // pred_fallthru
      _
    %v47 = vld [vmem:[#allocation2] sm:$0xff]
    %v48 = vld [vmem:[#allocation2 + $0x8] sm:$0xff]
    %v49 = vld [vmem:[#allocation2 + $0x10] sm:$0xff]
    %v50 = vld [vmem:[#allocation2 + $0x18] sm:$0xff]
    %v51 = vld [vmem:[#allocation2 + $0x20] sm:$0xff]
    %v52 = vld [vmem:[#allocation2 + $0x28] sm:$0xff]
    %v53 = vld [vmem:[#allocation2 + $0x30] sm:$0xff]
    %v54 = vld [vmem:[#allocation2 + $0x38] sm:$0xff]
    %v55 = vld [vmem:[#allocation2 + $0x40] sm:$0xff]
    %v56 = vld [vmem:[#allocation2 + $0x48] sm:$0xff]
    %v57 = vld [vmem:[#allocation2 + $0x50] sm:$0xff]
    %v58 = vld [vmem:[#allocation2 + $0x58] sm:$0xff]
    %v59 = vld [vmem:[#allocation2 + $0x60] sm:$0xff]
    %v60 = vld [vmem:[#allocation2 + $0x68] sm:$0xff]
    %v61 = vld [vmem:[#allocation2 + $0x70] sm:$0xff]
    %v62 = vld [vmem:[#allocation2 + $0x78] sm:$0xff]
    %v63 = vld [vmem:[#allocation2 + $0x80] sm:$0xff]
    %v64 = vld [vmem:[#allocation2 + $0x88] sm:$0xff]
    %v65 = vld [vmem:[#allocation2 + $0x90] sm:$0xff]
    %v66 = vld [vmem:[#allocation2 + $0x98] sm:$0xff]
    %v67 = vld [vmem:[#allocation2 + $0xa0] sm:$0xff]
    %v68 = vld [vmem:[#allocation2 + $0xa8] sm:$0xff]
    %v69 = vld [vmem:[#allocation2 + $0xb0] sm:$0xff]
    %v70 = vld [vmem:[#allocation2 + $0xb8] sm:$0xff]
    %v71 = vld [vmem:[#allocation2 + $0xc0] sm:$0xff]
    %v72 = vld [vmem:[#allocation2 + $0xc8] sm:$0xff]
    %v73 = vld [vmem:[#allocation2 + $0xd0] sm:$0xff]
    %v74 = vld [vmem:[#allocation2 + $0xd8] sm:$0xff]
    %v75 = vunpack.c.l.s8.bf16 %v47
    %v76 = vunpack.c.l.s8.bf16 %v48
    %v77 = vunpack.c.l.s8.bf16 %v49
    %v78 = vunpack.c.l.s8.bf16 %v50
    %v79 = vunpack.c.h.s8.bf16 %v47
    %v80 = vunpack.c.h.s8.bf16 %v48
    %v81 = vunpack.c.h.s8.bf16 %v49
    %v82 = vunpack.c.h.s8.bf16 %v50
    %v83 = vunpack.c.l.s8.bf16 %v51
    %v84 = vunpack.c.l.s8.bf16 %v52
    %v85 = vunpack.c.l.s8.bf16 %v53
    %v86 = vunpack.c.l.s8.bf16 %v54
    %v87 = vunpack.c.h.s8.bf16 %v51
    %v88 = vunpack.c.h.s8.bf16 %v52
    %v89 = vunpack.c.h.s8.bf16 %v53
    %v90 = vunpack.c.h.s8.bf16 %v54
    %v91 = vunpack.c.l.s8.bf16 %v55
    %v92 = vunpack.c.l.s8.bf16 %v56
    %v93 = vunpack.c.l.s8.bf16 %v57
    %v94 = vunpack.c.l.s8.bf16 %v58
    %v95 = vunpack.c.h.s8.bf16 %v55
    %v96 = vunpack.c.h.s8.bf16 %v56
    %v97 = vunpack.c.h.s8.bf16 %v57
    %v98 = vunpack.c.h.s8.bf16 %v58
    %v99 = vunpack.c.l.s8.bf16 %v59
    %v100 = vunpack.c.l.s8.bf16 %v60
    %v101 = vunpack.c.l.s8.bf16 %v61
    %v102 = vunpack.c.l.s8.bf16 %v62
    %v103 = vunpack.c.h.s8.bf16 %v59
    %v104 = vunpack.c.h.s8.bf16 %v60
    %v105 = vunpack.c.h.s8.bf16 %v61
    %v106 = vunpack.c.h.s8.bf16 %v62
    %v107 = vunpack.c.l.s8.bf16 %v63
    %v108 = vunpack.c.l.s8.bf16 %v64
    %v109 = vunpack.c.l.s8.bf16 %v65
    %v110 = vunpack.c.l.s8.bf16 %v66
    %v111 = vunpack.c.h.s8.bf16 %v63
    %v112 = vunpack.c.h.s8.bf16 %v64
    %v113 = vunpack.c.h.s8.bf16 %v65
    %v114 = vunpack.c.h.s8.bf16 %v66
    %v115 = vunpack.c.l.s8.bf16 %v67
    %v116 = vunpack.c.l.s8.bf16 %v68
    %v117 = vunpack.c.l.s8.bf16 %v69
    %v118 = vunpack.c.l.s8.bf16 %v70
    %v119 = vunpack.c.h.s8.bf16 %v67
    %v120 = vunpack.c.h.s8.bf16 %v68
    %v121 = vunpack.c.h.s8.bf16 %v69
    %v122 = vunpack.c.h.s8.bf16 %v70
    %v123 = vunpack.c.l.s8.bf16 %v71
    %v124 = vunpack.c.l.s8.bf16 %v72
    %v125 = vunpack.c.l.s8.bf16 %v73
    %v126 = vunpack.c.l.s8.bf16 %v74
    %v127 = vunpack.c.h.s8.bf16 %v71
    %v128 = vunpack.c.h.s8.bf16 %v72
    %v129 = vunpack.c.h.s8.bf16 %v73
    %v130 = vunpack.c.h.s8.bf16 %v74
    %v131 = vld [vmem:[#allocation5] sm:$0xff]
    %v132 = vld [vmem:[#allocation5 + $0x8] sm:$0xff]
    %v133 = vld [vmem:[#allocation5 + $0x10] sm:$0xff]
    %v134 = vld [vmem:[#allocation5 + $0x18] sm:$0xff]
    %v135 = vld [vmem:[#allocation5 + $0x20] sm:$0xff]
    %v136 = vld [vmem:[#allocation5 + $0x28] sm:$0xff]
    %v137 = vld [vmem:[#allocation5 + $0x30] sm:$0xff]
    %v138 = vld [vmem:[#allocation5 + $0x38] sm:$0xff]
    %v139 = vld [vmem:[#allocation5 + $0x40] sm:$0xff]
    %v140 = vld [vmem:[#allocation5 + $0x48] sm:$0xff]
    %v141 = vld [vmem:[#allocation5 + $0x50] sm:$0xff]
    %v142 = vld [vmem:[#allocation5 + $0x58] sm:$0xff]
    %v143 = vld [vmem:[#allocation5 + $0x60] sm:$0xff]
    %v144 = vld [vmem:[#allocation5 + $0x68] sm:$0xff]
    %v145 = vld [vmem:[#allocation5 + $0x70] sm:$0xff]
    %v146 = vld [vmem:[#allocation5 + $0x78] sm:$0xff]
    %v147 = vld [vmem:[#allocation5 + $0x80] sm:$0xff]
    %v148 = vld [vmem:[#allocation5 + $0x88] sm:$0xff]
    %v149 = vld [vmem:[#allocation5 + $0x90] sm:$0xff]
    %v150 = vld [vmem:[#allocation5 + $0x98] sm:$0xff]
    %v151 = vld [vmem:[#allocation5 + $0xa0] sm:$0xff]
    %v152 = vld [vmem:[#allocation5 + $0xa8] sm:$0xff]
    %v153 = vld [vmem:[#allocation5 + $0xb0] sm:$0xff]
    %v154 = vld [vmem:[#allocation5 + $0xb8] sm:$0xff]
    %v155 = vld [vmem:[#allocation5 + $0xc0] sm:$0xff]
    %v156 = vld [vmem:[#allocation5 + $0xc8] sm:$0xff]
    %v157 = vld [vmem:[#allocation5 + $0xd0] sm:$0xff]
    %v158 = vld [vmem:[#allocation5 + $0xd8] sm:$0xff]
    %v159 = vld [vmem:[#allocation5 + $0xe0] sm:$0xff]
    %v160 = vld [vmem:[#allocation5 + $0xe8] sm:$0xff]
    %v161 = vld [vmem:[#allocation5 + $0xf0] sm:$0xff]
    %v162 = vld [vmem:[#allocation5 + $0xf8] sm:$0xff]
    %v163 = vld [vmem:[#allocation5 + $0x100] sm:$0xff]
    %v164 = vld [vmem:[#allocation5 + $0x108] sm:$0xff]
    %v165 = vld [vmem:[#allocation5 + $0x110] sm:$0xff]
    %v166 = vld [vmem:[#allocation5 + $0x118] sm:$0xff]
    %v167 = vld [vmem:[#allocation5 + $0x120] sm:$0xff]
    %v168 = vld [vmem:[#allocation5 + $0x128] sm:$0xff]
    %v169 = vld [vmem:[#allocation5 + $0x130] sm:$0xff]
    %v170 = vld [vmem:[#allocation5 + $0x138] sm:$0xff]
    %v171 = vld [vmem:[#allocation5 + $0x140] sm:$0xff]
    %v172 = vld [vmem:[#allocation5 + $0x148] sm:$0xff]
    %v173 = vld [vmem:[#allocation5 + $0x150] sm:$0xff]
    %v174 = vld [vmem:[#allocation5 + $0x158] sm:$0xff]
    %v175 = vld [vmem:[#allocation5 + $0x160] sm:$0xff]
    %v176 = vld [vmem:[#allocation5 + $0x168] sm:$0xff]
    %v177 = vld [vmem:[#allocation5 + $0x170] sm:$0xff]
    %v178 = vld [vmem:[#allocation5 + $0x178] sm:$0xff]
    %v179 = vunpack.c.l.s8.bf16 %v131
    %v180 = vunpack.c.l.s8.bf16 %v132
    %v181 = vunpack.c.l.s8.bf16 %v133
    %v182 = vunpack.c.h.s8.bf16 %v131
    %v183 = vunpack.c.h.s8.bf16 %v132
    %v184 = vunpack.c.h.s8.bf16 %v133
    %v185 = vunpack.c.l.s8.bf16 %v134
    %v186 = vunpack.c.l.s8.bf16 %v135
    %v187 = vunpack.c.l.s8.bf16 %v136
    %v188 = vunpack.c.h.s8.bf16 %v134
    %v189 = vunpack.c.h.s8.bf16 %v135
    %v190 = vunpack.c.h.s8.bf16 %v136
    %v191 = vunpack.c.l.s8.bf16 %v137
    %v192 = vunpack.c.l.s8.bf16 %v138
    %v193 = vunpack.c.l.s8.bf16 %v139
    %v194 = vunpack.c.h.s8.bf16 %v137
    %v195 = vunpack.c.h.s8.bf16 %v138
    %v196 = vunpack.c.h.s8.bf16 %v139
    %v197 = vunpack.c.l.s8.bf16 %v140
    %v198 = vunpack.c.l.s8.bf16 %v141
    %v199 = vunpack.c.l.s8.bf16 %v142
    %v200 = vunpack.c.h.s8.bf16 %v140
    %v201 = vunpack.c.h.s8.bf16 %v141
    %v202 = vunpack.c.h.s8.bf16 %v142
    %v203 = vunpack.c.l.s8.bf16 %v143
    %v204 = vunpack.c.l.s8.bf16 %v144
    %v205 = vunpack.c.l.s8.bf16 %v145
    %v206 = vunpack.c.h.s8.bf16 %v143
    %v207 = vunpack.c.h.s8.bf16 %v144
    %v208 = vunpack.c.h.s8.bf16 %v145
    %v209 = vunpack.c.l.s8.bf16 %v146
    %v210 = vunpack.c.l.s8.bf16 %v147
    %v211 = vunpack.c.l.s8.bf16 %v148
    %v212 = vunpack.c.h.s8.bf16 %v146
    %v213 = vunpack.c.h.s8.bf16 %v147
    %v214 = vunpack.c.h.s8.bf16 %v148
    %v215 = vunpack.c.l.s8.bf16 %v149
    %v216 = vunpack.c.l.s8.bf16 %v150
    %v217 = vunpack.c.l.s8.bf16 %v151
    %v218 = vunpack.c.h.s8.bf16 %v149
    %v219 = vunpack.c.h.s8.bf16 %v150
    %v220 = vunpack.c.h.s8.bf16 %v151
    %v221 = vunpack.c.l.s8.bf16 %v152
    %v222 = vunpack.c.l.s8.bf16 %v153
    %v223 = vunpack.c.l.s8.bf16 %v154
    %v224 = vunpack.c.h.s8.bf16 %v152
    %v225 = vunpack.c.h.s8.bf16 %v153
    %v226 = vunpack.c.h.s8.bf16 %v154
    %v227 = vunpack.c.l.s8.bf16 %v155
    %v228 = vunpack.c.l.s8.bf16 %v156
    %v229 = vunpack.c.l.s8.bf16 %v157
    %v230 = vunpack.c.h.s8.bf16 %v155
    %v231 = vunpack.c.h.s8.bf16 %v156
    %v232 = vunpack.c.h.s8.bf16 %v157
    %v233 = vunpack.c.l.s8.bf16 %v158
    %v234 = vunpack.c.l.s8.bf16 %v159
    %v235 = vunpack.c.l.s8.bf16 %v160
    %v236 = vunpack.c.h.s8.bf16 %v158
    %v237 = vunpack.c.h.s8.bf16 %v159
    %v238 = vunpack.c.h.s8.bf16 %v160
    %v239 = vunpack.c.l.s8.bf16 %v161
    %v240 = vunpack.c.l.s8.bf16 %v162
    %v241 = vunpack.c.l.s8.bf16 %v163
    %v242 = vunpack.c.h.s8.bf16 %v161
    %v243 = vunpack.c.h.s8.bf16 %v162
    %v244 = vunpack.c.h.s8.bf16 %v163
    %v245 = vunpack.c.l.s8.bf16 %v164
    %v246 = vunpack.c.l.s8.bf16 %v165
    %v247 = vunpack.c.l.s8.bf16 %v166
    %v248 = vunpack.c.h.s8.bf16 %v164
    %v249 = vunpack.c.h.s8.bf16 %v165
    %v250 = vunpack.c.h.s8.bf16 %v166
    %v251 = vunpack.c.l.s8.bf16 %v167
    %v252 = vunpack.c.l.s8.bf16 %v168
    %v253 = vunpack.c.l.s8.bf16 %v169
    %v254 = vunpack.c.h.s8.bf16 %v167
    %v255 = vunpack.c.h.s8.bf16 %v168
    %v256 = vunpack.c.h.s8.bf16 %v169
    %v257 = vunpack.c.l.s8.bf16 %v170
    %v258 = vunpack.c.l.s8.bf16 %v171
    %v259 = vunpack.c.l.s8.bf16 %v172
    %v260 = vunpack.c.h.s8.bf16 %v170
    %v261 = vunpack.c.h.s8.bf16 %v171
    %v262 = vunpack.c.h.s8.bf16 %v172
    %v263 = vunpack.c.l.s8.bf16 %v173
    %v264 = vunpack.c.l.s8.bf16 %v174
    %v265 = vunpack.c.l.s8.bf16 %v175
    %v266 = vunpack.c.h.s8.bf16 %v173
    %v267 = vunpack.c.h.s8.bf16 %v174
    %v268 = vunpack.c.h.s8.bf16 %v175
    %v269 = vunpack.c.l.s8.bf16 %v176
    %v270 = vunpack.c.l.s8.bf16 %v177
    %v271 = vunpack.c.l.s8.bf16 %v178
    %v272 = vunpack.c.h.s8.bf16 %v176
    %v273 = vunpack.c.h.s8.bf16 %v177
    %v274 = vunpack.c.h.s8.bf16 %v178
    %275 = vmatprep.subr.bf16.mxu0 %v180
    %276 = vmatpush1.bf16.msra.mxu0 %v179
    %277 = vmatprep.subr.bf16.mxu0 %v183
    %278 = vmatpush1.bf16.msra.mxu0 %v182
    %279 = vmatprep.subr.bf16.mxu0 %v186
    %280 = vmatpush1.bf16.msra.mxu0 %v185
    %281 = vmatprep.subr.bf16.mxu0 %v189
    %282 = vmatpush1.bf16.msra.mxu0 %v188
    %283 = vmatprep.subr.bf16.mxu0 %v192
    %284 = vmatpush1.bf16.msra.mxu0 %v191
    %285 = vmatprep.subr.bf16.mxu0 %v195
    %286 = vmatpush1.bf16.msra.mxu0 %v194
    %287 = vmatprep.subr.bf16.mxu0 %v198
    %288 = vmatpush1.bf16.msra.mxu0 %v197
    %289 = vmatprep.subr.bf16.mxu0 %v201
    %290 = vmatpush1.bf16.msra.mxu0 %v200
    %291 = vmatprep.subr.bf16.mxu0 %v204
    %292 = vmatpush1.bf16.msra.mxu0 %v203
    %293 = vmatprep.subr.bf16.mxu0 %v207
    %294 = vmatpush1.bf16.msra.mxu0 %v206
    %295 = vmatprep.subr.bf16.mxu0 %v210
    %296 = vmatpush1.bf16.msra.mxu0 %v209
    %297 = vmatprep.subr.bf16.mxu0 %v213
    %298 = vmatpush1.bf16.msra.mxu0 %v212
    %299 = vmatprep.subr.bf16.mxu0 %v216
    %300 = vmatpush1.bf16.msra.mxu0 %v215
    %301 = vmatprep.subr.bf16.mxu0 %v219
    %302 = vmatpush1.bf16.msra.mxu0 %v218
    %303 = vmatprep.subr.bf16.mxu0 %v222
    %304 = vmatpush1.bf16.msra.mxu0 %v221
    %305 = vmatprep.subr.bf16.mxu0 %v225
    %306 = vmatpush1.bf16.msra.mxu0 %v224
    %307 = vmatprep.mubr.bf16.mxu0 %v76
    %308 = vmatmul.mubr.bf16.gmra.mrb[0].mxu0 %v75
    %v309 = vpop.f32.mrb[0].mxu0
    %v310 = vadd.f32 0.0, %v309
    %v311 = vpop.f32.mrb[0].mxu0
    %v312 = vadd.f32 0.0, %v311
    %v313 = vpop.f32.mrb[0].mxu0
    %v314 = vadd.f32 0.0, %v313
    %v315 = vpop.f32.mrb[0].mxu0
    %v316 = vadd.f32 0.0, %v315
    %317 = vmatprep.mubr.bf16.mxu0 %v80
    %318 = vmatmul.mubr.bf16.gmra.mrb[0].mxu0 %v79
    %v319 = vpop.f32.mrb[0].mxu0
    %v320 = vadd.f32 0.0, %v319
    %v321 = vpop.f32.mrb[0].mxu0
    %v322 = vadd.f32 0.0, %v321
    %v323 = vpop.f32.mrb[0].mxu0
    %v324 = vadd.f32 0.0, %v323
    %v325 = vpop.f32.mrb[0].mxu0
    %v326 = vadd.f32 0.0, %v325
    %327 = vmatprep.mubr.bf16.mxu0 %v84
    %328 = vmatmul.mubr.bf16.gmra.mrb[0].mxu0 %v83
    %v329 = vpop.f32.mrb[0].mxu0
    %v330 = vadd.f32 0.0, %v329
    %v331 = vpop.f32.mrb[0].mxu0
    %v332 = vadd.f32 0.0, %v331
    %v333 = vpop.f32.mrb[0].mxu0
    %v334 = vadd.f32 0.0, %v333
    %v335 = vpop.f32.mrb[0].mxu0
    %v336 = vadd.f32 0.0, %v335
    %337 = vmatprep.mubr.bf16.mxu0 %v88
    %338 = vmatmul.mubr.bf16.gmra.mrb[0].mxu0 %v87
    %v339 = vpop.f32.mrb[0].mxu0
    %v340 = vadd.f32 0.0, %v339
    %v341 = vpop.f32.mrb[0].mxu0
    %v342 = vadd.f32 0.0, %v341
    %v343 = vpop.f32.mrb[0].mxu0
    %v344 = vadd.f32 0.0, %v343
    %v345 = vpop.f32.mrb[0].mxu0
    %v346 = vadd.f32 0.0, %v345
    %347 = vmatprep.mubr.bf16.mxu0 %v92
    %348 = vmatmul.mubr.bf16.gmra.mrb[0].mxu0 %v91
    %v349 = vpop.f32.mrb[0].mxu0
    %v350 = vadd.f32 0.0, %v349
    %v351 = vpop.f32.mrb[0].mxu0
    %v352 = vadd.f32 0.0, %v351
    %v353 = vpop.f32.mrb[0].mxu0
    %v354 = vadd.f32 0.0, %v353
    %v355 = vpop.f32.mrb[0].mxu0
    %v356 = vadd.f32 0.0, %v355
    %357 = vmatprep.mubr.bf16.mxu0 %v96
    %358 = vmatmul.mubr.bf16.gmra.mrb[0].mxu0 %v95
    %v359 = vpop.f32.mrb[0].mxu0
    %v360 = vadd.f32 0.0, %v359
    %v361 = vpop.f32.mrb[0].mxu0
    %v362 = vadd.f32 0.0, %v361
    %v363 = vpop.f32.mrb[0].mxu0
    %v364 = vadd.f32 0.0, %v363
    %v365 = vpop.f32.mrb[0].mxu0
    %v366 = vadd.f32 0.0, %v365
    %367 = vmatprep.mubr.bf16.mxu0 %v100
    %368 = vmatmul.mubr.bf16.gmra.mrb[0].mxu0 %v99
    %v369 = vpop.f32.mrb[0].mxu0
    %v370 = vadd.f32 0.0, %v369
    %v371 = vpop.f32.mrb[0].mxu0
    %v372 = vadd.f32 0.0, %v371
    %v373 = vpop.f32.mrb[0].mxu0
    %v374 = vadd.f32 0.0, %v373
    %v375 = vpop.f32.mrb[0].mxu0
    %v376 = vadd.f32 0.0, %v375
    %377 = vmatprep.mubr.bf16.mxu0 %v104
    %378 = vmatmul.mubr.bf16.gmra.mrb[0].mxu0 %v103
    %v379 = vpop.f32.mrb[0].mxu0
    %v380 = vadd.f32 0.0, %v379
    %v381 = vpop.f32.mrb[0].mxu0
    %v382 = vadd.f32 0.0, %v381
    %v383 = vpop.f32.mrb[0].mxu0
    %v384 = vadd.f32 0.0, %v383
    %v385 = vpop.f32.mrb[0].mxu0
    %v386 = vadd.f32 0.0, %v385
    %387 = vmatprep.mubr.bf16.mxu0 %v108
    %388 = vmatmul.mubr.bf16.gmra.mrb[0].mxu0 %v107
    %v389 = vpop.f32.mrb[0].mxu0
    %v390 = vadd.f32 0.0, %v389
    %v391 = vpop.f32.mrb[0].mxu0
    %v392 = vadd.f32 0.0, %v391
    %v393 = vpop.f32.mrb[0].mxu0
    %v394 = vadd.f32 0.0, %v393
    %v395 = vpop.f32.mrb[0].mxu0
    %v396 = vadd.f32 0.0, %v395
    %397 = vmatprep.mubr.bf16.mxu0 %v112
    %398 = vmatmul.mubr.bf16.gmra.mrb[0].mxu0 %v111
    %v399 = vpop.f32.mrb[0].mxu0
    %v400 = vadd.f32 0.0, %v399
    %v401 = vpop.f32.mrb[0].mxu0
    %v402 = vadd.f32 0.0, %v401
    %v403 = vpop.f32.mrb[0].mxu0
    %v404 = vadd.f32 0.0, %v403
    %v405 = vpop.f32.mrb[0].mxu0
    %v406 = vadd.f32 0.0, %v405
    %407 = vmatprep.mubr.bf16.mxu0 %v116
    %408 = vmatmul.mubr.bf16.gmra.mrb[0].mxu0 %v115
    %v409 = vpop.f32.mrb[0].mxu0
    %v410 = vadd.f32 0.0, %v409
    %v411 = vpop.f32.mrb[0].mxu0
    %v412 = vadd.f32 0.0, %v411
    %v413 = vpop.f32.mrb[0].mxu0
    %v414 = vadd.f32 0.0, %v413
    %v415 = vpop.f32.mrb[0].mxu0
    %v416 = vadd.f32 0.0, %v415
    %417 = vmatprep.mubr.bf16.mxu0 %v120
    %418 = vmatmul.mubr.bf16.gmra.mrb[0].mxu0 %v119
    %v419 = vpop.f32.mrb[0].mxu0
    %v420 = vadd.f32 0.0, %v419
    %v421 = vpop.f32.mrb[0].mxu0
    %v422 = vadd.f32 0.0, %v421
    %v423 = vpop.f32.mrb[0].mxu0
    %v424 = vadd.f32 0.0, %v423
    %v425 = vpop.f32.mrb[0].mxu0
    %v426 = vadd.f32 0.0, %v425
    %427 = vmatprep.mubr.bf16.mxu0 %v124
    %428 = vmatmul.mubr.bf16.gmra.mrb[0].mxu0 %v123
    %v429 = vpop.f32.mrb[0].mxu0
    %v430 = vadd.f32 0.0, %v429
    %v431 = vpop.f32.mrb[0].mxu0
    %v432 = vadd.f32 0.0, %v431
    %v433 = vpop.f32.mrb[0].mxu0
    %v434 = vadd.f32 0.0, %v433
    %v435 = vpop.f32.mrb[0].mxu0
    %v436 = vadd.f32 0.0, %v435
    %437 = vmatprep.mubr.bf16.mxu0 %v128
    %438 = vmatmul.mubr.bf16.gmra.mrb[0].mxu0 %v127
    %v439 = vpop.f32.mrb[0].mxu0
    %v440 = vadd.f32 0.0, %v439
    %v441 = vpop.f32.mrb[0].mxu0
    %v442 = vadd.f32 0.0, %v441
    %v443 = vpop.f32.mrb[0].mxu0
    %v444 = vadd.f32 0.0, %v443
    %v445 = vpop.f32.mrb[0].mxu0
    %v446 = vadd.f32 0.0, %v445
    %447 = vdwg.mxu0
    %448 = vmatprep.subr.bf16.mxu0 %v228
    %449 = vmatpush1.bf16.msra.mxu0 %v227
    %450 = vmatprep.subr.bf16.mxu0 %v231
    %451 = vmatpush1.bf16.msra.mxu0 %v230
    %452 = vmatprep.subr.bf16.mxu0 %v234
    %453 = vmatpush1.bf16.msra.mxu0 %v233
    %454 = vmatprep.subr.bf16.mxu0 %v237
    %455 = vmatpush1.bf16.msra.mxu0 %v236
    %456 = vmatprep.subr.bf16.mxu0 %v240
    %457 = vmatpush1.bf16.msra.mxu0 %v239
    %458 = vmatprep.subr.bf16.mxu0 %v243
    %459 = vmatpush1.bf16.msra.mxu0 %v242
    %460 = vmatprep.subr.bf16.mxu0 %v246
    %461 = vmatpush1.bf16.msra.mxu0 %v245
    %462 = vmatprep.subr.bf16.mxu0 %v249
    %463 = vmatpush1.bf16.msra.mxu0 %v248
    %464 = vmatprep.subr.bf16.mxu0 %v252
    %465 = vmatpush1.bf16.msra.mxu0 %v251
    %466 = vmatprep.subr.bf16.mxu0 %v255
    %467 = vmatpush1.bf16.msra.mxu0 %v254
    %468 = vmatprep.subr.bf16.mxu0 %v258
    %469 = vmatpush1.bf16.msra.mxu0 %v257
    %470 = vmatprep.subr.bf16.mxu0 %v261
    %471 = vmatpush1.bf16.msra.mxu0 %v260
    %472 = vmatprep.subr.bf16.mxu0 %v264
    %473 = vmatpush1.bf16.msra.mxu0 %v263
    %474 = vmatprep.subr.bf16.mxu0 %v267
    %475 = vmatpush1.bf16.msra.mxu0 %v266
    %476 = vmatprep.subr.bf16.mxu0 %v270
    %477 = vmatpush1.bf16.msra.mxu0 %v269
    %478 = vmatprep.subr.bf16.mxu0 %v273
    %479 = vmatpush1.bf16.msra.mxu0 %v272
    %480 = vmatprep.mubr.bf16.mxu0 %v78
    %481 = vmatmul.mubr.bf16.gmra.mrb[0].mxu0 %v77
    %v482 = vpop.f32.mrb[0].mxu0
    %v483 = vadd.f32 %v310, %v482
    %v484 = vpop.f32.mrb[0].mxu0
    %v485 = vadd.f32 %v312, %v484
    %v486 = vpop.f32.mrb[0].mxu0
    %v487 = vadd.f32 %v314, %v486
    %v488 = vpop.f32.mrb[0].mxu0
    %v489 = vadd.f32 %v316, %v488
    %490 = vmatprep.mubr.bf16.mxu0 %v82
    %491 = vmatmul.mubr.bf16.gmra.mrb[0].mxu0 %v81
    %v492 = vpop.f32.mrb[0].mxu0
    %v493 = vadd.f32 %v320, %v492
    %v494 = vpop.f32.mrb[0].mxu0
    %v495 = vadd.f32 %v322, %v494
    %v496 = vpop.f32.mrb[0].mxu0
    %v497 = vadd.f32 %v324, %v496
    %v498 = vpop.f32.mrb[0].mxu0
    %v499 = vadd.f32 %v326, %v498
    %500 = vmatprep.mubr.bf16.mxu0 %v86
    %501 = vmatmul.mubr.bf16.gmra.mrb[0].mxu0 %v85
    %v502 = vpop.f32.mrb[0].mxu0
    %v503 = vadd.f32 %v330, %v502
    %v504 = vpop.f32.mrb[0].mxu0
    %v505 = vadd.f32 %v332, %v504
    %v506 = vpop.f32.mrb[0].mxu0
    %v507 = vadd.f32 %v334, %v506
    %v508 = vpop.f32.mrb[0].mxu0
    %v509 = vadd.f32 %v336, %v508
    %510 = vmatprep.mubr.bf16.mxu0 %v90
    %511 = vmatmul.mubr.bf16.gmra.mrb[0].mxu0 %v89
    %v512 = vpop.f32.mrb[0].mxu0
    %v513 = vadd.f32 %v340, %v512
    %v514 = vpop.f32.mrb[0].mxu0
    %v515 = vadd.f32 %v342, %v514
    %v516 = vpop.f32.mrb[0].mxu0
    %v517 = vadd.f32 %v344, %v516
    %v518 = vpop.f32.mrb[0].mxu0
    %v519 = vadd.f32 %v346, %v518
    %520 = vmatprep.mubr.bf16.mxu0 %v94
    %521 = vmatmul.mubr.bf16.gmra.mrb[0].mxu0 %v93
    %v522 = vpop.f32.mrb[0].mxu0
    %v523 = vadd.f32 %v350, %v522
    %v524 = vpop.f32.mrb[0].mxu0
    %v525 = vadd.f32 %v352, %v524
    %v526 = vpop.f32.mrb[0].mxu0
    %v527 = vadd.f32 %v354, %v526
    %v528 = vpop.f32.mrb[0].mxu0
    %v529 = vadd.f32 %v356, %v528
    %530 = vmatprep.mubr.bf16.mxu0 %v98
    %531 = vmatmul.mubr.bf16.gmra.mrb[0].mxu0 %v97
    %v532 = vpop.f32.mrb[0].mxu0
    %v533 = vadd.f32 %v360, %v532
    %v534 = vpop.f32.mrb[0].mxu0
    %v535 = vadd.f32 %v362, %v534
    %v536 = vpop.f32.mrb[0].mxu0
    %v537 = vadd.f32 %v364, %v536
    %v538 = vpop.f32.mrb[0].mxu0
    %v539 = vadd.f32 %v366, %v538
    %540 = vmatprep.mubr.bf16.mxu0 %v102
    %541 = vmatmul.mubr.bf16.gmra.mrb[0].mxu0 %v101
    %v542 = vpop.f32.mrb[0].mxu0
    %v543 = vadd.f32 %v370, %v542
    %v544 = vpop.f32.mrb[0].mxu0
    %v545 = vadd.f32 %v372, %v544
    %v546 = vpop.f32.mrb[0].mxu0
    %v547 = vadd.f32 %v374, %v546
    %v548 = vpop.f32.mrb[0].mxu0
    %v549 = vadd.f32 %v376, %v548
    %550 = vmatprep.mubr.bf16.mxu0 %v106
    %551 = vmatmul.mubr.bf16.gmra.mrb[0].mxu0 %v105
    %v552 = vpop.f32.mrb[0].mxu0
    %v553 = vadd.f32 %v380, %v552
    %v554 = vpop.f32.mrb[0].mxu0
    %v555 = vadd.f32 %v382, %v554
    %v556 = vpop.f32.mrb[0].mxu0
    %v557 = vadd.f32 %v384, %v556
    %v558 = vpop.f32.mrb[0].mxu0
    %v559 = vadd.f32 %v386, %v558
    %560 = vmatprep.mubr.bf16.mxu0 %v110
    %561 = vmatmul.mubr.bf16.gmra.mrb[0].mxu0 %v109
    %v562 = vpop.f32.mrb[0].mxu0
    %v563 = vadd.f32 %v390, %v562
    %v564 = vpop.f32.mrb[0].mxu0
    %v565 = vadd.f32 %v392, %v564
    %v566 = vpop.f32.mrb[0].mxu0
    %v567 = vadd.f32 %v394, %v566
    %v568 = vpop.f32.mrb[0].mxu0
    %v569 = vadd.f32 %v396, %v568
    %570 = vmatprep.mubr.bf16.mxu0 %v114
    %571 = vmatmul.mubr.bf16.gmra.mrb[0].mxu0 %v113
    %v572 = vpop.f32.mrb[0].mxu0
    %v573 = vadd.f32 %v400, %v572
    %v574 = vpop.f32.mrb[0].mxu0
    %v575 = vadd.f32 %v402, %v574
    %v576 = vpop.f32.mrb[0].mxu0
    %v577 = vadd.f32 %v404, %v576
    %v578 = vpop.f32.mrb[0].mxu0
    %v579 = vadd.f32 %v406, %v578
    %580 = vmatprep.mubr.bf16.mxu0 %v118
    %581 = vmatmul.mubr.bf16.gmra.mrb[0].mxu0 %v117
    %v582 = vpop.f32.mrb[0].mxu0
    %v583 = vadd.f32 %v410, %v582
    %v584 = vpop.f32.mrb[0].mxu0
    %v585 = vadd.f32 %v412, %v584
    %v586 = vpop.f32.mrb[0].mxu0
    %v587 = vadd.f32 %v414, %v586
    %v588 = vpop.f32.mrb[0].mxu0
    %v589 = vadd.f32 %v416, %v588
    %590 = vmatprep.mubr.bf16.mxu0 %v122
    %591 = vmatmul.mubr.bf16.gmra.mrb[0].mxu0 %v121
    %v592 = vpop.f32.mrb[0].mxu0
    %v593 = vadd.f32 %v420, %v592
    %v594 = vpop.f32.mrb[0].mxu0
    %v595 = vadd.f32 %v422, %v594
    %v596 = vpop.f32.mrb[0].mxu0
    %v597 = vadd.f32 %v424, %v596
    %v598 = vpop.f32.mrb[0].mxu0
    %v599 = vadd.f32 %v426, %v598
    %600 = vmatprep.mubr.bf16.mxu0 %v126
    %601 = vmatmul.mubr.bf16.gmra.mrb[0].mxu0 %v125
    %v602 = vpop.f32.mrb[0].mxu0
    %v603 = vadd.f32 %v430, %v602
    %v604 = vpop.f32.mrb[0].mxu0
    %v605 = vadd.f32 %v432, %v604
    %v606 = vpop.f32.mrb[0].mxu0
    %v607 = vadd.f32 %v434, %v606
    %v608 = vpop.f32.mrb[0].mxu0
    %v609 = vadd.f32 %v436, %v608
    %610 = vmatprep.mubr.bf16.mxu0 %v130
    %611 = vmatmul.mubr.bf16.gmra.mrb[0].mxu0 %v129
    %v612 = vpop.f32.mrb[0].mxu0
    %v613 = vadd.f32 %v440, %v612
    %v614 = vpop.f32.mrb[0].mxu0
    %v615 = vadd.f32 %v442, %v614
    %v616 = vpop.f32.mrb[0].mxu0
    %v617 = vadd.f32 %v444, %v616
    %v618 = vpop.f32.mrb[0].mxu0
    %v619 = vadd.f32 %v446, %v618
    %620 = vdwg.mxu0
    %621 = vmatprep.subr.bf16.mxu0 0
    %622 = vmatpush1.bf16.msra.mxu0 %v181
    %623 = vmatprep.subr.bf16.mxu0 0
    %624 = vmatpush1.bf16.msra.mxu0 %v184
    %625 = vmatprep.subr.bf16.mxu0 0
    %626 = vmatpush1.bf16.msra.mxu0 %v187
    %627 = vmatprep.subr.bf16.mxu0 0
    %628 = vmatpush1.bf16.msra.mxu0 %v190
    %629 = vmatprep.subr.bf16.mxu0 0
    %630 = vmatpush1.bf16.msra.mxu0 %v193
    %631 = vmatprep.subr.bf16.mxu0 0
    %632 = vmatpush1.bf16.msra.mxu0 %v196
    %633 = vmatprep.subr.bf16.mxu0 0
    %634 = vmatpush1.bf16.msra.mxu0 %v199
    %635 = vmatprep.subr.bf16.mxu0 0
    %636 = vmatpush1.bf16.msra.mxu0 %v202
    %637 = vmatprep.subr.bf16.mxu0 0
    %638 = vmatpush1.bf16.msra.mxu0 %v205
    %639 = vmatprep.subr.bf16.mxu0 0
    %640 = vmatpush1.bf16.msra.mxu0 %v208
    %641 = vmatprep.subr.bf16.mxu0 0
    %642 = vmatpush1.bf16.msra.mxu0 %v211
    %643 = vmatprep.subr.bf16.mxu0 0
    %644 = vmatpush1.bf16.msra.mxu0 %v214
    %645 = vmatprep.subr.bf16.mxu0 0
    %646 = vmatpush1.bf16.msra.mxu0 %v217
    %647 = vmatprep.subr.bf16.mxu0 0
    %648 = vmatpush1.bf16.msra.mxu0 %v220
    %649 = vmatprep.subr.bf16.mxu0 0
    %650 = vmatpush1.bf16.msra.mxu0 %v223
    %651 = vmatprep.subr.bf16.mxu0 0
    %652 = vmatpush1.bf16.msra.mxu0 %v226
    %653 = vmatprep.mubr.bf16.mxu0 %v76
    %654 = vmatmul.mubr.bf16.gmra.mrb[0].mxu0 %v75
    %v655 = vpop.f32.mrb[0].mxu0
    %v656 = vadd.f32 0.0, %v655
    %v657 = vpop.f32.mrb[0].mxu0
    %v658 = vpop.f32.mrb[0].mxu0
    %v659 = vadd.f32 0.0, %v658
    %v660 = vpop.f32.mrb[0].mxu0
    %661 = vmatprep.mubr.bf16.mxu0 %v80
    %662 = vmatmul.mubr.bf16.gmra.mrb[0].mxu0 %v79
    %v663 = vpop.f32.mrb[0].mxu0
    %v664 = vadd.f32 0.0, %v663
    %v665 = vpop.f32.mrb[0].mxu0
    %v666 = vpop.f32.mrb[0].mxu0
    %v667 = vadd.f32 0.0, %v666
    %v668 = vpop.f32.mrb[0].mxu0
    %669 = vmatprep.mubr.bf16.mxu0 %v84
    %670 = vmatmul.mubr.bf16.gmra.mrb[0].mxu0 %v83
    %v671 = vpop.f32.mrb[0].mxu0
    %v672 = vadd.f32 0.0, %v671
    %v673 = vpop.f32.mrb[0].mxu0
    %v674 = vpop.f32.mrb[0].mxu0
    %v675 = vadd.f32 0.0, %v674
    %v676 = vpop.f32.mrb[0].mxu0
    %677 = vmatprep.mubr.bf16.mxu0 %v88
    %678 = vmatmul.mubr.bf16.gmra.mrb[0].mxu0 %v87
    %v679 = vpop.f32.mrb[0].mxu0
    %v680 = vadd.f32 0.0, %v679
    %v681 = vpop.f32.mrb[0].mxu0
    %v682 = vpop.f32.mrb[0].mxu0
    %v683 = vadd.f32 0.0, %v682
    %v684 = vpop.f32.mrb[0].mxu0
    %685 = vmatprep.mubr.bf16.mxu0 %v92
    %686 = vmatmul.mubr.bf16.gmra.mrb[0].mxu0 %v91
    %v687 = vpop.f32.mrb[0].mxu0
    %v688 = vadd.f32 0.0, %v687
    %v689 = vpop.f32.mrb[0].mxu0
    %v690 = vpop.f32.mrb[0].mxu0
    %v691 = vadd.f32 0.0, %v690
    %v692 = vpop.f32.mrb[0].mxu0
    %693 = vmatprep.mubr.bf16.mxu0 %v96
    %694 = vmatmul.mubr.bf16.gmra.mrb[0].mxu0 %v95
    %v695 = vpop.f32.mrb[0].mxu0
    %v696 = vadd.f32 0.0, %v695
    %v697 = vpop.f32.mrb[0].mxu0
    %v698 = vpop.f32.mrb[0].mxu0
    %v699 = vadd.f32 0.0, %v698
    %v700 = vpop.f32.mrb[0].mxu0
    %701 = vmatprep.mubr.bf16.mxu0 %v100
    %702 = vmatmul.mubr.bf16.gmra.mrb[0].mxu0 %v99
    %v703 = vpop.f32.mrb[0].mxu0
    %v704 = vadd.f32 0.0, %v703
    %v705 = vpop.f32.mrb[0].mxu0
    %v706 = vpop.f32.mrb[0].mxu0
    %v707 = vadd.f32 0.0, %v706
    %v708 = vpop.f32.mrb[0].mxu0
    %709 = vmatprep.mubr.bf16.mxu0 %v104
    %710 = vmatmul.mubr.bf16.gmra.mrb[0].mxu0 %v103
    %v711 = vpop.f32.mrb[0].mxu0
    %v712 = vadd.f32 0.0, %v711
    %v713 = vpop.f32.mrb[0].mxu0
    %v714 = vpop.f32.mrb[0].mxu0
    %v715 = vadd.f32 0.0, %v714
    %v716 = vpop.f32.mrb[0].mxu0
    %717 = vmatprep.mubr.bf16.mxu0 %v108
    %718 = vmatmul.mubr.bf16.gmra.mrb[0].mxu0 %v107
    %v719 = vpop.f32.mrb[0].mxu0
    %v720 = vadd.f32 0.0, %v719
    %v721 = vpop.f32.mrb[0].mxu0
    %v722 = vpop.f32.mrb[0].mxu0
    %v723 = vadd.f32 0.0, %v722
    %v724 = vpop.f32.mrb[0].mxu0
    %725 = vmatprep.mubr.bf16.mxu0 %v112
    %726 = vmatmul.mubr.bf16.gmra.mrb[0].mxu0 %v111
    %v727 = vpop.f32.mrb[0].mxu0
    %v728 = vadd.f32 0.0, %v727
    %v729 = vpop.f32.mrb[0].mxu0
    %v730 = vpop.f32.mrb[0].mxu0
    %v731 = vadd.f32 0.0, %v730
    %v732 = vpop.f32.mrb[0].mxu0
    %733 = vmatprep.mubr.bf16.mxu0 %v116
    %734 = vmatmul.mubr.bf16.gmra.mrb[0].mxu0 %v115
    %v735 = vpop.f32.mrb[0].mxu0
    %v736 = vadd.f32 0.0, %v735
    %v737 = vpop.f32.mrb[0].mxu0
    %v738 = vpop.f32.mrb[0].mxu0
    %v739 = vadd.f32 0.0, %v738
    %v740 = vpop.f32.mrb[0].mxu0
    %741 = vmatprep.mubr.bf16.mxu0 %v120
    %742 = vmatmul.mubr.bf16.gmra.mrb[0].mxu0 %v119
    %v743 = vpop.f32.mrb[0].mxu0
    %v744 = vadd.f32 0.0, %v743
    %v745 = vpop.f32.mrb[0].mxu0
    %v746 = vpop.f32.mrb[0].mxu0
    %v747 = vadd.f32 0.0, %v746
    %v748 = vpop.f32.mrb[0].mxu0
    %749 = vmatprep.mubr.bf16.mxu0 %v124
    %750 = vmatmul.mubr.bf16.gmra.mrb[0].mxu0 %v123
    %v751 = vpop.f32.mrb[0].mxu0
    %v752 = vadd.f32 0.0, %v751
    %v753 = vpop.f32.mrb[0].mxu0
    %v754 = vpop.f32.mrb[0].mxu0
    %v755 = vadd.f32 0.0, %v754
    %v756 = vpop.f32.mrb[0].mxu0
    %757 = vmatprep.mubr.bf16.mxu0 %v128
    %758 = vmatmul.mubr.bf16.gmra.mrb[0].mxu0 %v127
    %v759 = vpop.f32.mrb[0].mxu0
    %v760 = vadd.f32 0.0, %v759
    %v761 = vpop.f32.mrb[0].mxu0
    %v762 = vpop.f32.mrb[0].mxu0
    %v763 = vadd.f32 0.0, %v762
    %v764 = vpop.f32.mrb[0].mxu0
    %765 = vdwg.mxu0
    %766 = vmatprep.subr.bf16.mxu0 0
    %767 = vmatpush1.bf16.msra.mxu0 %v229
    %768 = vmatprep.subr.bf16.mxu0 0
    %769 = vmatpush1.bf16.msra.mxu0 %v232
    %770 = vmatprep.subr.bf16.mxu0 0
    %771 = vmatpush1.bf16.msra.mxu0 %v235
    %772 = vmatprep.subr.bf16.mxu0 0
    %773 = vmatpush1.bf16.msra.mxu0 %v238
    %774 = vmatprep.subr.bf16.mxu0 0
    %775 = vmatpush1.bf16.msra.mxu0 %v241
    %776 = vmatprep.subr.bf16.mxu0 0
    %777 = vmatpush1.bf16.msra.mxu0 %v244
    %778 = vmatprep.subr.bf16.mxu0 0
    %779 = vmatpush1.bf16.msra.mxu0 %v247
    %780 = vmatprep.subr.bf16.mxu0 0
    %781 = vmatpush1.bf16.msra.mxu0 %v250
    %782 = vmatprep.subr.bf16.mxu0 0
    %783 = vmatpush1.bf16.msra.mxu0 %v253
    %784 = vmatprep.subr.bf16.mxu0 0
    %785 = vmatpush1.bf16.msra.mxu0 %v256
    %786 = vmatprep.subr.bf16.mxu0 0
    %787 = vmatpush1.bf16.msra.mxu0 %v259
    %788 = vmatprep.subr.bf16.mxu0 0
    %789 = vmatpush1.bf16.msra.mxu0 %v262
    %790 = vmatprep.subr.bf16.mxu0 0
    %791 = vmatpush1.bf16.msra.mxu0 %v265
    %792 = vmatprep.subr.bf16.mxu0 0
    %793 = vmatpush1.bf16.msra.mxu0 %v268
    %794 = vmatprep.subr.bf16.mxu0 0
    %795 = vmatpush1.bf16.msra.mxu0 %v271
    %796 = vmatprep.subr.bf16.mxu0 0
    %797 = vmatpush1.bf16.msra.mxu0 %v274
    %798 = vmatprep.mubr.bf16.mxu0 %v78
    %799 = vmatmul.mubr.bf16.gmra.mrb[0].mxu0 %v77
    %v800 = vpop.f32.mrb[0].mxu0
    %v801 = vadd.f32 %v656, %v800
    %v802 = vpop.f32.mrb[0].mxu0
    %v803 = vpop.f32.mrb[0].mxu0
    %v804 = vadd.f32 %v659, %v803
    %v805 = vpop.f32.mrb[0].mxu0
    %806 = vmatprep.mubr.bf16.mxu0 %v82
    %807 = vmatmul.mubr.bf16.gmra.mrb[0].mxu0 %v81
    %v808 = vpop.f32.mrb[0].mxu0
    %v809 = vadd.f32 %v664, %v808
    %v810 = vpop.f32.mrb[0].mxu0
    %v811 = vpop.f32.mrb[0].mxu0
    %v812 = vadd.f32 %v667, %v811
    %v813 = vpop.f32.mrb[0].mxu0
    %814 = vmatprep.mubr.bf16.mxu0 %v86
    %815 = vmatmul.mubr.bf16.gmra.mrb[0].mxu0 %v85
    %v816 = vpop.f32.mrb[0].mxu0
    %v817 = vadd.f32 %v672, %v816
    %v818 = vpop.f32.mrb[0].mxu0
    %v819 = vpop.f32.mrb[0].mxu0
    %v820 = vadd.f32 %v675, %v819
    %v821 = vpop.f32.mrb[0].mxu0
    %822 = vmatprep.mubr.bf16.mxu0 %v90
    %823 = vmatmul.mubr.bf16.gmra.mrb[0].mxu0 %v89
    %v824 = vpop.f32.mrb[0].mxu0
    %v825 = vadd.f32 %v680, %v824
    %v826 = vpop.f32.mrb[0].mxu0
    %v827 = vpop.f32.mrb[0].mxu0
    %v828 = vadd.f32 %v683, %v827
    %v829 = vpop.f32.mrb[0].mxu0
    %830 = vmatprep.mubr.bf16.mxu0 %v94
    %831 = vmatmul.mubr.bf16.gmra.mrb[0].mxu0 %v93
    %v832 = vpop.f32.mrb[0].mxu0
    %v833 = vadd.f32 %v688, %v832
    %v834 = vpop.f32.mrb[0].mxu0
    %v835 = vpop.f32.mrb[0].mxu0
    %v836 = vadd.f32 %v691, %v835
    %v837 = vpop.f32.mrb[0].mxu0
    %838 = vmatprep.mubr.bf16.mxu0 %v98
    %839 = vmatmul.mubr.bf16.gmra.mrb[0].mxu0 %v97
    %v840 = vpop.f32.mrb[0].mxu0
    %v841 = vadd.f32 %v696, %v840
    %v842 = vpop.f32.mrb[0].mxu0
    %v843 = vpop.f32.mrb[0].mxu0
    %v844 = vadd.f32 %v699, %v843
    %v845 = vpop.f32.mrb[0].mxu0
    %846 = vmatprep.mubr.bf16.mxu0 %v102
    %847 = vmatmul.mubr.bf16.gmra.mrb[0].mxu0 %v101
    %v848 = vpop.f32.mrb[0].mxu0
    %v849 = vadd.f32 %v704, %v848
    %v850 = vpop.f32.mrb[0].mxu0
    %v851 = vpop.f32.mrb[0].mxu0
    %v852 = vadd.f32 %v707, %v851
    %v853 = vpop.f32.mrb[0].mxu0
    %854 = vmatprep.mubr.bf16.mxu0 %v106
    %855 = vmatmul.mubr.bf16.gmra.mrb[0].mxu0 %v105
    %v856 = vpop.f32.mrb[0].mxu0
    %v857 = vadd.f32 %v712, %v856
    %v858 = vpop.f32.mrb[0].mxu0
    %v859 = vpop.f32.mrb[0].mxu0
    %v860 = vadd.f32 %v715, %v859
    %v861 = vpop.f32.mrb[0].mxu0
    %862 = vmatprep.mubr.bf16.mxu0 %v110
    %863 = vmatmul.mubr.bf16.gmra.mrb[0].mxu0 %v109
    %v864 = vpop.f32.mrb[0].mxu0
    %v865 = vadd.f32 %v720, %v864
    %v866 = vpop.f32.mrb[0].mxu0
    %v867 = vpop.f32.mrb[0].mxu0
    %v868 = vadd.f32 %v723, %v867
    %v869 = vpop.f32.mrb[0].mxu0
    %870 = vmatprep.mubr.bf16.mxu0 %v114
    %871 = vmatmul.mubr.bf16.gmra.mrb[0].mxu0 %v113
    %v872 = vpop.f32.mrb[0].mxu0
    %v873 = vadd.f32 %v728, %v872
    %v874 = vpop.f32.mrb[0].mxu0
    %v875 = vpop.f32.mrb[0].mxu0
    %v876 = vadd.f32 %v731, %v875
    %v877 = vpop.f32.mrb[0].mxu0
    %878 = vmatprep.mubr.bf16.mxu0 %v118
    %879 = vmatmul.mubr.bf16.gmra.mrb[0].mxu0 %v117
    %v880 = vpop.f32.mrb[0].mxu0
    %v881 = vadd.f32 %v736, %v880
    %v882 = vpop.f32.mrb[0].mxu0
    %v883 = vpop.f32.mrb[0].mxu0
    %v884 = vadd.f32 %v739, %v883
    %v885 = vpop.f32.mrb[0].mxu0
    %886 = vmatprep.mubr.bf16.mxu0 %v122
    %887 = vmatmul.mubr.bf16.gmra.mrb[0].mxu0 %v121
    %v888 = vpop.f32.mrb[0].mxu0
    %v889 = vadd.f32 %v744, %v888
    %v890 = vpop.f32.mrb[0].mxu0
    %v891 = vpop.f32.mrb[0].mxu0
    %v892 = vadd.f32 %v747, %v891
    %v893 = vpop.f32.mrb[0].mxu0
    %894 = vmatprep.mubr.bf16.mxu0 %v126
    %895 = vmatmul.mubr.bf16.gmra.mrb[0].mxu0 %v125
    %v896 = vpop.f32.mrb[0].mxu0
    %v897 = vadd.f32 %v752, %v896
    %v898 = vpop.f32.mrb[0].mxu0
    %v899 = vpop.f32.mrb[0].mxu0
    %v900 = vadd.f32 %v755, %v899
    %v901 = vpop.f32.mrb[0].mxu0
    %902 = vmatprep.mubr.bf16.mxu0 %v130
    %903 = vmatmul.mubr.bf16.gmra.mrb[0].mxu0 %v129
    %v904 = vpop.f32.mrb[0].mxu0
    %v905 = vadd.f32 %v760, %v904
    %v906 = vpop.f32.mrb[0].mxu0
    %v907 = vpop.f32.mrb[0].mxu0
    %v908 = vadd.f32 %v763, %v907
    %v909 = vpop.f32.mrb[0].mxu0
    %910 = vdwg.mxu0
    %v911 = vld [vmem:[%s2] sm:$0x7]
    %v913 = vlaneseq
    %v914 = vshrl.u32 %v913, 7
    %v915 = vsub.s32 0, %v914
    %v916 = vrot.slane %v911, %v915
    %v917 = vlaneseq
    %v918 = vshrl.u32 %v917, 7
    %v919 = vsub.s32 1, %v918
    %v920 = vrot.slane %v911, %v919
    %v921 = vlaneseq
    %v922 = vshrl.u32 %v921, 7
    %v923 = vsub.s32 2, %v922
    %v924 = vrot.slane %v911, %v923
    %v928 = vmul.f32 %v916, %v483
    %v929 = vmul.f32 %v920, %v485
    %v930 = vmul.f32 %v924, %v801
    %v931 = vmul.f32 %v916, %v487
    %v932 = vmul.f32 %v920, %v489
    %v933 = vmul.f32 %v924, %v804
    %v934 = vmul.f32 %v916, %v493
    %v935 = vmul.f32 %v920, %v495
    %v936 = vmul.f32 %v924, %v809
    %v937 = vmul.f32 %v916, %v497
    %v938 = vmul.f32 %v920, %v499
    %v939 = vmul.f32 %v924, %v812
    %v940 = vmul.f32 %v916, %v503
    %v941 = vmul.f32 %v920, %v505
    %v942 = vmul.f32 %v924, %v817
    %v943 = vmul.f32 %v916, %v507
    %v944 = vmul.f32 %v920, %v509
    %v945 = vmul.f32 %v924, %v820
    %v946 = vmul.f32 %v916, %v513
    %v947 = vmul.f32 %v920, %v515
    %v948 = vmul.f32 %v924, %v825
    %v949 = vmul.f32 %v916, %v517
    %v950 = vmul.f32 %v920, %v519
    %v951 = vmul.f32 %v924, %v828
    %v952 = vmul.f32 %v916, %v523
    %v953 = vmul.f32 %v920, %v525
    %v954 = vmul.f32 %v924, %v833
    %v955 = vmul.f32 %v916, %v527
    %v956 = vmul.f32 %v920, %v529
    %v957 = vmul.f32 %v924, %v836
    %v958 = vmul.f32 %v916, %v533
    %v959 = vmul.f32 %v920, %v535
    %v960 = vmul.f32 %v924, %v841
    %v961 = vmul.f32 %v916, %v537
    %v962 = vmul.f32 %v920, %v539
    %v963 = vmul.f32 %v924, %v844
    %v964 = vmul.f32 %v916, %v543
    %v965 = vmul.f32 %v920, %v545
    %v966 = vmul.f32 %v924, %v849
    %v967 = vmul.f32 %v916, %v547
    %v968 = vmul.f32 %v920, %v549
    %v969 = vmul.f32 %v924, %v852
    %v970 = vmul.f32 %v916, %v553
    %v971 = vmul.f32 %v920, %v555
    %v972 = vmul.f32 %v924, %v857
    %v973 = vmul.f32 %v916, %v557
    %v974 = vmul.f32 %v920, %v559
    %v975 = vmul.f32 %v924, %v860
    %v976 = vmul.f32 %v916, %v563
    %v977 = vmul.f32 %v920, %v565
    %v978 = vmul.f32 %v924, %v865
    %v979 = vmul.f32 %v916, %v567
    %v980 = vmul.f32 %v920, %v569
    %v981 = vmul.f32 %v924, %v868
    %v982 = vmul.f32 %v916, %v573
    %v983 = vmul.f32 %v920, %v575
    %v984 = vmul.f32 %v924, %v873
    %v985 = vmul.f32 %v916, %v577
    %v986 = vmul.f32 %v920, %v579
    %v987 = vmul.f32 %v924, %v876
    %v988 = vmul.f32 %v916, %v583
    %v989 = vmul.f32 %v920, %v585
    %v990 = vmul.f32 %v924, %v881
    %v991 = vmul.f32 %v916, %v587
    %v992 = vmul.f32 %v920, %v589
    %v993 = vmul.f32 %v924, %v884
    %v994 = vmul.f32 %v916, %v593
    %v995 = vmul.f32 %v920, %v595
    %v996 = vmul.f32 %v924, %v889
    %v997 = vmul.f32 %v916, %v597
    %v998 = vmul.f32 %v920, %v599
    %v999 = vmul.f32 %v924, %v892
    %v1000 = vmul.f32 %v916, %v603
    %v1001 = vmul.f32 %v920, %v605
    %v1002 = vmul.f32 %v924, %v897
    %v1003 = vmul.f32 %v916, %v607
    %v1004 = vmul.f32 %v920, %v609
    %v1005 = vmul.f32 %v924, %v900
    %v1006 = vmul.f32 %v916, %v613
    %v1007 = vmul.f32 %v920, %v615
    %v1008 = vmul.f32 %v924, %v905
    %v1009 = vmul.f32 %v916, %v617
    %v1010 = vmul.f32 %v920, %v619
    %v1011 = vmul.f32 %v924, %v908
    %v1012 = vld [vmem:[%s3] sm:$0x7]
    %v1014 = vlaneseq
    %v1015 = vshrl.u32 %v1014, 7
    %v1016 = vsub.s32 0, %v1015
    %v1017 = vrot.slane %v1012, %v1016
    %v1018 = vlaneseq
    %v1019 = vshrl.u32 %v1018, 7
    %v1020 = vsub.s32 1, %v1019
    %v1021 = vrot.slane %v1012, %v1020
    %v1022 = vlaneseq
    %v1023 = vshrl.u32 %v1022, 7
    %v1024 = vsub.s32 2, %v1023
    %v1025 = vrot.slane %v1012, %v1024
    %v1029 = vadd.f32 %v928, %v1017
    %v1030 = vadd.f32 %v929, %v1021
    %v1031 = vadd.f32 %v930, %v1025
    %v1032 = vadd.f32 %v931, %v1017
    %v1033 = vadd.f32 %v932, %v1021
    %v1034 = vadd.f32 %v933, %v1025
    %v1035 = vadd.f32 %v934, %v1017
    %v1036 = vadd.f32 %v935, %v1021
    %v1037 = vadd.f32 %v936, %v1025
    %v1038 = vadd.f32 %v937, %v1017
    %v1039 = vadd.f32 %v938, %v1021
    %v1040 = vadd.f32 %v939, %v1025
    %v1041 = vadd.f32 %v940, %v1017
    %v1042 = vadd.f32 %v941, %v1021
    %v1043 = vadd.f32 %v942, %v1025
    %v1044 = vadd.f32 %v943, %v1017
    %v1045 = vadd.f32 %v944, %v1021
    %v1046 = vadd.f32 %v945, %v1025
    %v1047 = vadd.f32 %v946, %v1017
    %v1048 = vadd.f32 %v947, %v1021
    %v1049 = vadd.f32 %v948, %v1025
    %v1050 = vadd.f32 %v949, %v1017
    %v1051 = vadd.f32 %v950, %v1021
    %v1052 = vadd.f32 %v951, %v1025
    %v1053 = vadd.f32 %v952, %v1017
    %v1054 = vadd.f32 %v953, %v1021
    %v1055 = vadd.f32 %v954, %v1025
    %v1056 = vadd.f32 %v955, %v1017
    %v1057 = vadd.f32 %v956, %v1021
    %v1058 = vadd.f32 %v957, %v1025
    %v1059 = vadd.f32 %v958, %v1017
    %v1060 = vadd.f32 %v959, %v1021
    %v1061 = vadd.f32 %v960, %v1025
    %v1062 = vadd.f32 %v961, %v1017
    %v1063 = vadd.f32 %v962, %v1021
    %v1064 = vadd.f32 %v963, %v1025
    %v1065 = vadd.f32 %v964, %v1017
    %v1066 = vadd.f32 %v965, %v1021
    %v1067 = vadd.f32 %v966, %v1025
    %v1068 = vadd.f32 %v967, %v1017
    %v1069 = vadd.f32 %v968, %v1021
    %v1070 = vadd.f32 %v969, %v1025
    %v1071 = vadd.f32 %v970, %v1017
    %v1072 = vadd.f32 %v971, %v1021
    %v1073 = vadd.f32 %v972, %v1025
    %v1074 = vadd.f32 %v973, %v1017
    %v1075 = vadd.f32 %v974, %v1021
    %v1076 = vadd.f32 %v975, %v1025
    %v1077 = vadd.f32 %v976, %v1017
    %v1078 = vadd.f32 %v977, %v1021
    %v1079 = vadd.f32 %v978, %v1025
    %v1080 = vadd.f32 %v979, %v1017
    %v1081 = vadd.f32 %v980, %v1021
    %v1082 = vadd.f32 %v981, %v1025
    %v1083 = vadd.f32 %v982, %v1017
    %v1084 = vadd.f32 %v983, %v1021
    %v1085 = vadd.f32 %v984, %v1025
    %v1086 = vadd.f32 %v985, %v1017
    %v1087 = vadd.f32 %v986, %v1021
    %v1088 = vadd.f32 %v987, %v1025
    %v1089 = vadd.f32 %v988, %v1017
    %v1090 = vadd.f32 %v989, %v1021
    %v1091 = vadd.f32 %v990, %v1025
    %v1092 = vadd.f32 %v991, %v1017
    %v1093 = vadd.f32 %v992, %v1021
    %v1094 = vadd.f32 %v993, %v1025
    %v1095 = vadd.f32 %v994, %v1017
    %v1096 = vadd.f32 %v995, %v1021
    %v1097 = vadd.f32 %v996, %v1025
    %v1098 = vadd.f32 %v997, %v1017
    %v1099 = vadd.f32 %v998, %v1021
    %v1100 = vadd.f32 %v999, %v1025
    %v1101 = vadd.f32 %v1000, %v1017
    %v1102 = vadd.f32 %v1001, %v1021
    %v1103 = vadd.f32 %v1002, %v1025
    %v1104 = vadd.f32 %v1003, %v1017
    %v1105 = vadd.f32 %v1004, %v1021
    %v1106 = vadd.f32 %v1005, %v1025
    %v1107 = vadd.f32 %v1006, %v1017
    %v1108 = vadd.f32 %v1007, %v1021
    %v1109 = vadd.f32 %v1008, %v1025
    %v1110 = vadd.f32 %v1009, %v1017
    %v1111 = vadd.f32 %v1010, %v1021
    %v1112 = vadd.f32 %v1011, %v1025
    %v1113 = vround.ne.pseudo %v1029
    %v1114 = vround.ne.pseudo %v1030
    %v1115 = vround.ne.pseudo %v1031
    %v1116 = vround.ne.pseudo %v1032
    %v1117 = vround.ne.pseudo %v1033
    %v1118 = vround.ne.pseudo %v1034
    %v1119 = vround.ne.pseudo %v1035
    %v1120 = vround.ne.pseudo %v1036
    %v1121 = vround.ne.pseudo %v1037
    %v1122 = vround.ne.pseudo %v1038
    %v1123 = vround.ne.pseudo %v1039
    %v1124 = vround.ne.pseudo %v1040
    %v1125 = vround.ne.pseudo %v1041
    %v1126 = vround.ne.pseudo %v1042
    %v1127 = vround.ne.pseudo %v1043
    %v1128 = vround.ne.pseudo %v1044
    %v1129 = vround.ne.pseudo %v1045
    %v1130 = vround.ne.pseudo %v1046
    %v1131 = vround.ne.pseudo %v1047
    %v1132 = vround.ne.pseudo %v1048
    %v1133 = vround.ne.pseudo %v1049
    %v1134 = vround.ne.pseudo %v1050
    %v1135 = vround.ne.pseudo %v1051
    %v1136 = vround.ne.pseudo %v1052
    %v1137 = vround.ne.pseudo %v1053
    %v1138 = vround.ne.pseudo %v1054
    %v1139 = vround.ne.pseudo %v1055
    %v1140 = vround.ne.pseudo %v1056
    %v1141 = vround.ne.pseudo %v1057
    %v1142 = vround.ne.pseudo %v1058
    %v1143 = vround.ne.pseudo %v1059
    %v1144 = vround.ne.pseudo %v1060
    %v1145 = vround.ne.pseudo %v1061
    %v1146 = vround.ne.pseudo %v1062
    %v1147 = vround.ne.pseudo %v1063
    %v1148 = vround.ne.pseudo %v1064
    %v1149 = vround.ne.pseudo %v1065
    %v1150 = vround.ne.pseudo %v1066
    %v1151 = vround.ne.pseudo %v1067
    %v1152 = vround.ne.pseudo %v1068
    %v1153 = vround.ne.pseudo %v1069
    %v1154 = vround.ne.pseudo %v1070
    %v1155 = vround.ne.pseudo %v1071
    %v1156 = vround.ne.pseudo %v1072
    %v1157 = vround.ne.pseudo %v1073
    %v1158 = vround.ne.pseudo %v1074
    %v1159 = vround.ne.pseudo %v1075
    %v1160 = vround.ne.pseudo %v1076
    %v1161 = vround.ne.pseudo %v1077
    %v1162 = vround.ne.pseudo %v1078
    %v1163 = vround.ne.pseudo %v1079
    %v1164 = vround.ne.pseudo %v1080
    %v1165 = vround.ne.pseudo %v1081
    %v1166 = vround.ne.pseudo %v1082
    %v1167 = vround.ne.pseudo %v1083
    %v1168 = vround.ne.pseudo %v1084
    %v1169 = vround.ne.pseudo %v1085
    %v1170 = vround.ne.pseudo %v1086
    %v1171 = vround.ne.pseudo %v1087
    %v1172 = vround.ne.pseudo %v1088
    %v1173 = vround.ne.pseudo %v1089
    %v1174 = vround.ne.pseudo %v1090
    %v1175 = vround.ne.pseudo %v1091
    %v1176 = vround.ne.pseudo %v1092
    %v1177 = vround.ne.pseudo %v1093
    %v1178 = vround.ne.pseudo %v1094
    %v1179 = vround.ne.pseudo %v1095
    %v1180 = vround.ne.pseudo %v1096
    %v1181 = vround.ne.pseudo %v1097
    %v1182 = vround.ne.pseudo %v1098
    %v1183 = vround.ne.pseudo %v1099
    %v1184 = vround.ne.pseudo %v1100
    %v1185 = vround.ne.pseudo %v1101
    %v1186 = vround.ne.pseudo %v1102
    %v1187 = vround.ne.pseudo %v1103
    %v1188 = vround.ne.pseudo %v1104
    %v1189 = vround.ne.pseudo %v1105
    %v1190 = vround.ne.pseudo %v1106
    %v1191 = vround.ne.pseudo %v1107
    %v1192 = vround.ne.pseudo %v1108
    %v1193 = vround.ne.pseudo %v1109
    %v1194 = vround.ne.pseudo %v1110
    %v1195 = vround.ne.pseudo %v1111
    %v1196 = vround.ne.pseudo %v1112
    %v1197 = vmax.f32 %v1113, -128.0
    %v1198 = vmax.f32 %v1114, -128.0
    %v1199 = vmax.f32 %v1115, -128.0
    %v1200 = vmax.f32 %v1116, -128.0
    %v1201 = vmax.f32 %v1117, -128.0
    %v1202 = vmax.f32 %v1118, -128.0
    %v1203 = vmax.f32 %v1119, -128.0
    %v1204 = vmax.f32 %v1120, -128.0
    %v1205 = vmax.f32 %v1121, -128.0
    %v1206 = vmax.f32 %v1122, -128.0
    %v1207 = vmax.f32 %v1123, -128.0
    %v1208 = vmax.f32 %v1124, -128.0
    %v1209 = vmax.f32 %v1125, -128.0
    %v1210 = vmax.f32 %v1126, -128.0
    %v1211 = vmax.f32 %v1127, -128.0
    %v1212 = vmax.f32 %v1128, -128.0
    %v1213 = vmax.f32 %v1129, -128.0
    %v1214 = vmax.f32 %v1130, -128.0
    %v1215 = vmax.f32 %v1131, -128.0
    %v1216 = vmax.f32 %v1132, -128.0
    %v1217 = vmax.f32 %v1133, -128.0
    %v1218 = vmax.f32 %v1134, -128.0
    %v1219 = vmax.f32 %v1135, -128.0
    %v1220 = vmax.f32 %v1136, -128.0
    %v1221 = vmax.f32 %v1137, -128.0
    %v1222 = vmax.f32 %v1138, -128.0
    %v1223 = vmax.f32 %v1139, -128.0
    %v1224 = vmax.f32 %v1140, -128.0
    %v1225 = vmax.f32 %v1141, -128.0
    %v1226 = vmax.f32 %v1142, -128.0
    %v1227 = vmax.f32 %v1143, -128.0
    %v1228 = vmax.f32 %v1144, -128.0
    %v1229 = vmax.f32 %v1145, -128.0
    %v1230 = vmax.f32 %v1146, -128.0
    %v1231 = vmax.f32 %v1147, -128.0
    %v1232 = vmax.f32 %v1148, -128.0
    %v1233 = vmax.f32 %v1149, -128.0
    %v1234 = vmax.f32 %v1150, -128.0
    %v1235 = vmax.f32 %v1151, -128.0
    %v1236 = vmax.f32 %v1152, -128.0
    %v1237 = vmax.f32 %v1153, -128.0
    %v1238 = vmax.f32 %v1154, -128.0
    %v1239 = vmax.f32 %v1155, -128.0
    %v1240 = vmax.f32 %v1156, -128.0
    %v1241 = vmax.f32 %v1157, -128.0
    %v1242 = vmax.f32 %v1158, -128.0
    %v1243 = vmax.f32 %v1159, -128.0
    %v1244 = vmax.f32 %v1160, -128.0
    %v1245 = vmax.f32 %v1161, -128.0
    %v1246 = vmax.f32 %v1162, -128.0
    %v1247 = vmax.f32 %v1163, -128.0
    %v1248 = vmax.f32 %v1164, -128.0
    %v1249 = vmax.f32 %v1165, -128.0
    %v1250 = vmax.f32 %v1166, -128.0
    %v1251 = vmax.f32 %v1167, -128.0
    %v1252 = vmax.f32 %v1168, -128.0
    %v1253 = vmax.f32 %v1169, -128.0
    %v1254 = vmax.f32 %v1170, -128.0
    %v1255 = vmax.f32 %v1171, -128.0
    %v1256 = vmax.f32 %v1172, -128.0
    %v1257 = vmax.f32 %v1173, -128.0
    %v1258 = vmax.f32 %v1174, -128.0
    %v1259 = vmax.f32 %v1175, -128.0
    %v1260 = vmax.f32 %v1176, -128.0
    %v1261 = vmax.f32 %v1177, -128.0
    %v1262 = vmax.f32 %v1178, -128.0
    %v1263 = vmax.f32 %v1179, -128.0
    %v1264 = vmax.f32 %v1180, -128.0
    %v1265 = vmax.f32 %v1181, -128.0
    %v1266 = vmax.f32 %v1182, -128.0
    %v1267 = vmax.f32 %v1183, -128.0
    %v1268 = vmax.f32 %v1184, -128.0
    %v1269 = vmax.f32 %v1185, -128.0
    %v1270 = vmax.f32 %v1186, -128.0
    %v1271 = vmax.f32 %v1187, -128.0
    %v1272 = vmax.f32 %v1188, -128.0
    %v1273 = vmax.f32 %v1189, -128.0
    %v1274 = vmax.f32 %v1190, -128.0
    %v1275 = vmax.f32 %v1191, -128.0
    %v1276 = vmax.f32 %v1192, -128.0
    %v1277 = vmax.f32 %v1193, -128.0
    %v1278 = vmax.f32 %v1194, -128.0
    %v1279 = vmax.f32 %v1195, -128.0
    %v1280 = vmax.f32 %v1196, -128.0
    %v1281 = vmin.f32 %v1197, 127.0
    %v1282 = vmin.f32 %v1198, 127.0
    %v1283 = vmin.f32 %v1199, 127.0
    %v1284 = vmin.f32 %v1200, 127.0
    %v1285 = vmin.f32 %v1201, 127.0
    %v1286 = vmin.f32 %v1202, 127.0
    %v1287 = vmin.f32 %v1203, 127.0
    %v1288 = vmin.f32 %v1204, 127.0
    %v1289 = vmin.f32 %v1205, 127.0
    %v1290 = vmin.f32 %v1206, 127.0
    %v1291 = vmin.f32 %v1207, 127.0
    %v1292 = vmin.f32 %v1208, 127.0
    %v1293 = vmin.f32 %v1209, 127.0
    %v1294 = vmin.f32 %v1210, 127.0
    %v1295 = vmin.f32 %v1211, 127.0
    %v1296 = vmin.f32 %v1212, 127.0
    %v1297 = vmin.f32 %v1213, 127.0
    %v1298 = vmin.f32 %v1214, 127.0
    %v1299 = vmin.f32 %v1215, 127.0
    %v1300 = vmin.f32 %v1216, 127.0
    %v1301 = vmin.f32 %v1217, 127.0
    %v1302 = vmin.f32 %v1218, 127.0
    %v1303 = vmin.f32 %v1219, 127.0
    %v1304 = vmin.f32 %v1220, 127.0
    %v1305 = vmin.f32 %v1221, 127.0
    %v1306 = vmin.f32 %v1222, 127.0
    %v1307 = vmin.f32 %v1223, 127.0
    %v1308 = vmin.f32 %v1224, 127.0
    %v1309 = vmin.f32 %v1225, 127.0
    %v1310 = vmin.f32 %v1226, 127.0
    %v1311 = vmin.f32 %v1227, 127.0
    %v1312 = vmin.f32 %v1228, 127.0
    %v1313 = vmin.f32 %v1229, 127.0
    %v1314 = vmin.f32 %v1230, 127.0
    %v1315 = vmin.f32 %v1231, 127.0
    %v1316 = vmin.f32 %v1232, 127.0
    %v1317 = vmin.f32 %v1233, 127.0
    %v1318 = vmin.f32 %v1234, 127.0
    %v1319 = vmin.f32 %v1235, 127.0
    %v1320 = vmin.f32 %v1236, 127.0
    %v1321 = vmin.f32 %v1237, 127.0
    %v1322 = vmin.f32 %v1238, 127.0
    %v1323 = vmin.f32 %v1239, 127.0
    %v1324 = vmin.f32 %v1240, 127.0
    %v1325 = vmin.f32 %v1241, 127.0
    %v1326 = vmin.f32 %v1242, 127.0
    %v1327 = vmin.f32 %v1243, 127.0
    %v1328 = vmin.f32 %v1244, 127.0
    %v1329 = vmin.f32 %v1245, 127.0
    %v1330 = vmin.f32 %v1246, 127.0
    %v1331 = vmin.f32 %v1247, 127.0
    %v1332 = vmin.f32 %v1248, 127.0
    %v1333 = vmin.f32 %v1249, 127.0
    %v1334 = vmin.f32 %v1250, 127.0
    %v1335 = vmin.f32 %v1251, 127.0
    %v1336 = vmin.f32 %v1252, 127.0
    %v1337 = vmin.f32 %v1253, 127.0
    %v1338 = vmin.f32 %v1254, 127.0
    %v1339 = vmin.f32 %v1255, 127.0
    %v1340 = vmin.f32 %v1256, 127.0
    %v1341 = vmin.f32 %v1257, 127.0
    %v1342 = vmin.f32 %v1258, 127.0
    %v1343 = vmin.f32 %v1259, 127.0
    %v1344 = vmin.f32 %v1260, 127.0
    %v1345 = vmin.f32 %v1261, 127.0
    %v1346 = vmin.f32 %v1262, 127.0
    %v1347 = vmin.f32 %v1263, 127.0
    %v1348 = vmin.f32 %v1264, 127.0
    %v1349 = vmin.f32 %v1265, 127.0
    %v1350 = vmin.f32 %v1266, 127.0
    %v1351 = vmin.f32 %v1267, 127.0
    %v1352 = vmin.f32 %v1268, 127.0
    %v1353 = vmin.f32 %v1269, 127.0
    %v1354 = vmin.f32 %v1270, 127.0
    %v1355 = vmin.f32 %v1271, 127.0
    %v1356 = vmin.f32 %v1272, 127.0
    %v1357 = vmin.f32 %v1273, 127.0
    %v1358 = vmin.f32 %v1274, 127.0
    %v1359 = vmin.f32 %v1275, 127.0
    %v1360 = vmin.f32 %v1276, 127.0
    %v1361 = vmin.f32 %v1277, 127.0
    %v1362 = vmin.f32 %v1278, 127.0
    %v1363 = vmin.f32 %v1279, 127.0
    %v1364 = vmin.f32 %v1280, 127.0
    %v1365 = vtrunc.f32 %v1281
    %v1366 = vtrunc.f32 %v1282
    %v1367 = vtrunc.f32 %v1283
    %v1368 = vtrunc.f32 %v1284
    %v1369 = vtrunc.f32 %v1285
    %v1370 = vtrunc.f32 %v1286
    %v1371 = vtrunc.f32 %v1287
    %v1372 = vtrunc.f32 %v1288
    %v1373 = vtrunc.f32 %v1289
    %v1374 = vtrunc.f32 %v1290
    %v1375 = vtrunc.f32 %v1291
    %v1376 = vtrunc.f32 %v1292
    %v1377 = vtrunc.f32 %v1293
    %v1378 = vtrunc.f32 %v1294
    %v1379 = vtrunc.f32 %v1295
    %v1380 = vtrunc.f32 %v1296
    %v1381 = vtrunc.f32 %v1297
    %v1382 = vtrunc.f32 %v1298
    %v1383 = vtrunc.f32 %v1299
    %v1384 = vtrunc.f32 %v1300
    %v1385 = vtrunc.f32 %v1301
    %v1386 = vtrunc.f32 %v1302
    %v1387 = vtrunc.f32 %v1303
    %v1388 = vtrunc.f32 %v1304
    %v1389 = vtrunc.f32 %v1305
    %v1390 = vtrunc.f32 %v1306
    %v1391 = vtrunc.f32 %v1307
    %v1392 = vtrunc.f32 %v1308
    %v1393 = vtrunc.f32 %v1309
    %v1394 = vtrunc.f32 %v1310
    %v1395 = vtrunc.f32 %v1311
    %v1396 = vtrunc.f32 %v1312
    %v1397 = vtrunc.f32 %v1313
    %v1398 = vtrunc.f32 %v1314
    %v1399 = vtrunc.f32 %v1315
    %v1400 = vtrunc.f32 %v1316
    %v1401 = vtrunc.f32 %v1317
    %v1402 = vtrunc.f32 %v1318
    %v1403 = vtrunc.f32 %v1319
    %v1404 = vtrunc.f32 %v1320
    %v1405 = vtrunc.f32 %v1321
    %v1406 = vtrunc.f32 %v1322
    %v1407 = vtrunc.f32 %v1323
    %v1408 = vtrunc.f32 %v1324
    %v1409 = vtrunc.f32 %v1325
    %v1410 = vtrunc.f32 %v1326
    %v1411 = vtrunc.f32 %v1327
    %v1412 = vtrunc.f32 %v1328
    %v1413 = vtrunc.f32 %v1329
    %v1414 = vtrunc.f32 %v1330
    %v1415 = vtrunc.f32 %v1331
    %v1416 = vtrunc.f32 %v1332
    %v1417 = vtrunc.f32 %v1333
    %v1418 = vtrunc.f32 %v1334
    %v1419 = vtrunc.f32 %v1335
    %v1420 = vtrunc.f32 %v1336
    %v1421 = vtrunc.f32 %v1337
    %v1422 = vtrunc.f32 %v1338
    %v1423 = vtrunc.f32 %v1339
    %v1424 = vtrunc.f32 %v1340
    %v1425 = vtrunc.f32 %v1341
    %v1426 = vtrunc.f32 %v1342
    %v1427 = vtrunc.f32 %v1343
    %v1428 = vtrunc.f32 %v1344
    %v1429 = vtrunc.f32 %v1345
    %v1430 = vtrunc.f32 %v1346
    %v1431 = vtrunc.f32 %v1347
    %v1432 = vtrunc.f32 %v1348
    %v1433 = vtrunc.f32 %v1349
    %v1434 = vtrunc.f32 %v1350
    %v1435 = vtrunc.f32 %v1351
    %v1436 = vtrunc.f32 %v1352
    %v1437 = vtrunc.f32 %v1353
    %v1438 = vtrunc.f32 %v1354
    %v1439 = vtrunc.f32 %v1355
    %v1440 = vtrunc.f32 %v1356
    %v1441 = vtrunc.f32 %v1357
    %v1442 = vtrunc.f32 %v1358
    %v1443 = vtrunc.f32 %v1359
    %v1444 = vtrunc.f32 %v1360
    %v1445 = vtrunc.f32 %v1361
    %v1446 = vtrunc.f32 %v1362
    %v1447 = vtrunc.f32 %v1363
    %v1448 = vtrunc.f32 %v1364
    %v1449 = vpack.c.f32.eXmY %v1365, %v1368, 312
    %v1453 = vpack.c.f32.eXmY %v1371, %v1374, 312
    %v1457 = vpack.c.b8 %v1453, %v1449
    %v1459 = vpack.c.f32.eXmY %v1366, %v1369, 312
    %v1463 = vpack.c.f32.eXmY %v1372, %v1375, 312
    %v1467 = vpack.c.b8 %v1463, %v1459
    %v1469 = vpack.c.f32.eXmY %v1367, %v1370, 312
    %v1473 = vpack.c.f32.eXmY %v1373, %v1376, 312
    %v1477 = vpack.c.b8 %v1473, %v1469
    %v1479 = vpack.c.f32.eXmY %v1377, %v1380, 312
    %v1483 = vpack.c.f32.eXmY %v1383, %v1386, 312
    %v1487 = vpack.c.b8 %v1483, %v1479
    %v1489 = vpack.c.f32.eXmY %v1378, %v1381, 312
    %v1493 = vpack.c.f32.eXmY %v1384, %v1387, 312
    %v1497 = vpack.c.b8 %v1493, %v1489
    %v1499 = vpack.c.f32.eXmY %v1379, %v1382, 312
    %v1503 = vpack.c.f32.eXmY %v1385, %v1388, 312
    %v1507 = vpack.c.b8 %v1503, %v1499
    %v1509 = vpack.c.f32.eXmY %v1389, %v1392, 312
    %v1513 = vpack.c.f32.eXmY %v1395, %v1398, 312
    %v1517 = vpack.c.b8 %v1513, %v1509
    %v1519 = vpack.c.f32.eXmY %v1390, %v1393, 312
    %v1523 = vpack.c.f32.eXmY %v1396, %v1399, 312
    %v1527 = vpack.c.b8 %v1523, %v1519
    %v1529 = vpack.c.f32.eXmY %v1391, %v1394, 312
    %v1533 = vpack.c.f32.eXmY %v1397, %v1400, 312
    %v1537 = vpack.c.b8 %v1533, %v1529
    %v1539 = vpack.c.f32.eXmY %v1401, %v1404, 312
    %v1543 = vpack.c.f32.eXmY %v1407, %v1410, 312
    %v1547 = vpack.c.b8 %v1543, %v1539
    %v1549 = vpack.c.f32.eXmY %v1402, %v1405, 312
    %v1553 = vpack.c.f32.eXmY %v1408, %v1411, 312
    %v1557 = vpack.c.b8 %v1553, %v1549
    %v1559 = vpack.c.f32.eXmY %v1403, %v1406, 312
    %v1563 = vpack.c.f32.eXmY %v1409, %v1412, 312
    %v1567 = vpack.c.b8 %v1563, %v1559
    %v1569 = vpack.c.f32.eXmY %v1413, %v1416, 312
    %v1573 = vpack.c.f32.eXmY %v1419, %v1422, 312
    %v1577 = vpack.c.b8 %v1573, %v1569
    %v1579 = vpack.c.f32.eXmY %v1414, %v1417, 312
    %v1583 = vpack.c.f32.eXmY %v1420, %v1423, 312
    %v1587 = vpack.c.b8 %v1583, %v1579
    %v1589 = vpack.c.f32.eXmY %v1415, %v1418, 312
    %v1593 = vpack.c.f32.eXmY %v1421, %v1424, 312
    %v1597 = vpack.c.b8 %v1593, %v1589
    %v1599 = vpack.c.f32.eXmY %v1425, %v1428, 312
    %v1603 = vpack.c.f32.eXmY %v1431, %v1434, 312
    %v1607 = vpack.c.b8 %v1603, %v1599
    %v1609 = vpack.c.f32.eXmY %v1426, %v1429, 312
    %v1613 = vpack.c.f32.eXmY %v1432, %v1435, 312
    %v1617 = vpack.c.b8 %v1613, %v1609
    %v1619 = vpack.c.f32.eXmY %v1427, %v1430, 312
    %v1623 = vpack.c.f32.eXmY %v1433, %v1436, 312
    %v1627 = vpack.c.b8 %v1623, %v1619
    %v1629 = vpack.c.f32.eXmY %v1437, %v1440, 312
    %v1633 = vpack.c.f32.eXmY %v1443, %v1446, 312
    %v1637 = vpack.c.b8 %v1633, %v1629
    %v1639 = vpack.c.f32.eXmY %v1438, %v1441, 312
    %v1643 = vpack.c.f32.eXmY %v1444, %v1447, 312
    %v1647 = vpack.c.b8 %v1643, %v1639
    %v1649 = vpack.c.f32.eXmY %v1439, %v1442, 312
    %v1653 = vpack.c.f32.eXmY %v1445, %v1448, 312
    %v1657 = vpack.c.b8 %v1653, %v1649
    %1659 = vst [vmem:[#allocation7] sm:$0xff] %v1457
    %1660 = vst [vmem:[#allocation7 + $0x8] sm:$0xff] %v1467
    %1661 = vst [vmem:[#allocation7 + $0x10] sm:$0xff] %v1477
    %1662 = vst [vmem:[#allocation7 + $0x18] sm:$0xff] %v1487
    %1663 = vst [vmem:[#allocation7 + $0x20] sm:$0xff] %v1497
    %1664 = vst [vmem:[#allocation7 + $0x28] sm:$0xff] %v1507
    %1665 = vst [vmem:[#allocation7 + $0x30] sm:$0xff] %v1517
    %1666 = vst [vmem:[#allocation7 + $0x38] sm:$0xff] %v1527
    %1667 = vst [vmem:[#allocation7 + $0x40] sm:$0xff] %v1537
    %1668 = vst [vmem:[#allocation7 + $0x48] sm:$0xff] %v1547
    %1669 = vst [vmem:[#allocation7 + $0x50] sm:$0xff] %v1557
    %1670 = vst [vmem:[#allocation7 + $0x58] sm:$0xff] %v1567
    %1671 = vst [vmem:[#allocation7 + $0x60] sm:$0xff] %v1577
    %1672 = vst [vmem:[#allocation7 + $0x68] sm:$0xff] %v1587
    %1673 = vst [vmem:[#allocation7 + $0x70] sm:$0xff] %v1597
    %1674 = vst [vmem:[#allocation7 + $0x78] sm:$0xff] %v1607
    %1675 = vst [vmem:[#allocation7 + $0x80] sm:$0xff] %v1617
    %1676 = vst [vmem:[#allocation7 + $0x88] sm:$0xff] %v1627
    %1677 = vst [vmem:[#allocation7 + $0x90] sm:$0xff] %v1637
    %1678 = vst [vmem:[#allocation7 + $0x98] sm:$0xff] %v1647
    %1679 = vst [vmem:[#allocation7 + $0xa0] sm:$0xff] %v1657
    // Predicated region
    $region26: #{tpu_custom_call.1} parent=1 // pred_check
      _
    $region27: #{tpu_custom_call.1} parent=1 // pred_check_branch
      %1681 = sbr.rel (0) target = $region29
    $region28: #{tpu_custom_call.1} parent=1 // pred_region
      %s1683 = ssub.s32 2688, 2688
      %1684 = vsyncadd [#allocation4], %s1683
      %s1685 = sshll.u32 [#allocation7], 4
      %s1686 = int_to_ptr.vmem [resolvable:$true] %s1685
      %1691 = dma.vmem_to_hbm [thread:$0]  %s1686, 2688, %s4, [#allocation4], 384, 384, 24
    $region29: #{tpu_custom_call.1} parent=1 // pred_fallthru
      _
    // Predicated region
    $region30: #{tpu_custom_call.1} parent=1 // pred_check
      _
    $region31: #{tpu_custom_call.1} parent=1 // pred_check_branch
      %1693 = sbr.rel (0) target = $region33
    $region32: #{tpu_custom_call.1} parent=1 // pred_region
      %1694 = dma.done [#allocation4], 2688
    $region33: #{tpu_custom_call.1} parent=1 // pred_fallthru
      _
    %1695 = vsyncpa [#allocation3], 1
    %1696 = vsyncpa [#allocation6], 1
    %1697 = vsyncpa [#allocation4], 1

</llo_original>
